<compile_context>
chip_gen: v7x
topology: tpu7x:2x2x1
jax: 0.10.0
libtpu: 0.0.40
codegen_flags: <defaults>
</compile_context>

<pallas_src>
import functools

import numpy as np
import jax
import jax.numpy as jnp
from jax.experimental import pallas as pl
from jax.experimental.pallas import tpu as pltpu


def _round_up(x, m):
    return ((x + m - 1) // m) * m


def _full_spec(shape):
    # Whole-array block (block dims == array dims, so no (8,128) constraint).
    return pl.BlockSpec(shape, lambda *_: (0,) * len(shape))


# ---------------------------------------------------------------------------
# Kernel 1: GNN encoder_q + F.normalize, tiled over node rows.
#   q = L2norm( meanpool( relu((A_hat @ X) @ W1 + b1) ) @ W2 + b2 )
# A_hat / X / pool arrive bf16 (MXU-native, halves the dominant DMA); everything
# accumulates in f32.  The node-row axis is a reduction into the pooled accumulator
# (the final linear + normalize run on the last grid step), so it is "arbitrary".
# NOTE: bf16 A_hat/X gives ~3-significant-digit agreement with a f32 torch encoder.
# TODO(synk): dense A_hat is O(num_nodes^2); a segment-sum aggregation would avoid it.
# ---------------------------------------------------------------------------
def _encoder_kernel(a_ref, x_ref, p_ref, w1_ref, b1_ref, w2_ref, b2_ref,
                    q_ref, acc_ref):
    r = pl.program_id(0)

    @pl.when(r == 0)
    def _():
        acc_ref[...] = jnp.zeros_like(acc_ref)

    ax = jnp.dot(a_ref[...], x_ref[...], preferred_element_type=jnp.float32)
    h = jnp.maximum(
        jnp.dot(ax, w1_ref[...], preferred_element_type=jnp.float32) + b1_ref[...],
        0.0)
    acc_ref[...] += jnp.dot(p_ref[...].astype(jnp.float32), h,
                            preferred_element_type=jnp.float32)

    @pl.when(r == pl.num_programs(0) - 1)
    def _():
        qv = jnp.dot(acc_ref[...], w2_ref[...],
                     preferred_element_type=jnp.float32) + b2_ref[...]
        # torch F.normalize(eps=1e-12) -> x * rsqrt(max(||x||^2, eps^2))  (EUP rsqrt)
        inv = jax.lax.rsqrt(
            jnp.maximum(jnp.sum(qv * qv, axis=1, keepdims=True), 1e-24))
        q_ref[...] = qv * inv


def encoder_forward(a_hat, x_pad, pool, w1, b1, w2, b2, *, tm):
    n_pad = a_hat.shape[0]
    g = pool.shape[0]
    dim_fc = w1.shape[1]
    dim_out = w2.shape[1]
    return pl.pallas_call(
        _encoder_kernel,
        grid=(n_pad // tm,),
        in_specs=[
            pl.BlockSpec((tm, n_pad), lambda r: (r, 0)),     # A_hat row tile (bf16)
            _full_spec(x_pad.shape),                         # X (bf16)
            pl.BlockSpec((g, tm), lambda r: (0, r)),         # pool column tile (bf16)
            _full_spec(w1.shape), _full_spec(b1.shape),
            _full_spec(w2.shape), _full_spec(b2.shape),
        ],
        out_specs=pl.BlockSpec((g, dim_out), lambda r: (0, 0)),
        out_shape=jax.ShapeDtypeStruct((g, dim_out), jnp.float32),
        scratch_shapes=[pltpu.VMEM((g, dim_fc), jnp.float32)],
        compiler_params=pltpu.CompilerParams(
            dimension_semantics=("arbitrary",)),
    )(a_hat, x_pad, pool, w1, b1, w2, b2)


# ---------------------------------------------------------------------------
# Kernel 2: L1 distance hot path + fused self-excluded row-min, tiled over N.
#   dist[s, j] = sum_e |sampled_pe[s, e] - path_encoding[j, e]|
# Binary path: |a-b| = a + b - 2ab  ->  ONE [S,E]x[E,TN] bf16 MXU matmul per tile
# (store-bound kernel: output emitted as bf16, exact for integer distances <= 256).
# Padded arch columns (j >= n_real) are stored as -inf so downstream ==/>= masks are
# never true there; self/padded columns are excluded from the running min with +inf.
# ---------------------------------------------------------------------------
def _dist_kernel(sid_ref, a_ref, pet_ref, d_ref, m_ref, *, n_real, binary, n_enc):
    j = pl.program_id(0)
    a = a_ref[...]                                     # [S, E]
    pet = pet_ref[...]                                 # [E, TN]
    if binary:
        ab = jnp.dot(a, pet, preferred_element_type=jnp.float32)          # [S, TN]
        a_sum = jnp.sum(a.astype(jnp.float32), axis=1, keepdims=True)     # [S, 1]
        pe_sum = jnp.sum(pet.astype(jnp.float32), axis=0, keepdims=True)  # [1, TN]
        dist = a_sum + pe_sum - 2.0 * ab
    else:
        # exact |a-b| fallback (VALU-bound; keep TN large so broadcasts amortize).
        # TODO(synk): bit-plane decompose small-integer encodings to reuse the MXU path.
        dist = jnp.zeros(d_ref.shape, jnp.float32)
        for e in range(n_enc):
            dist = dist + jnp.abs(a[:, e:e + 1].astype(jnp.float32)
                                  - pet[e:e + 1, :].astype(jnp.float32))

    s, tn = d_ref.shape
    col = jax.lax.broadcasted_iota(jnp.int32, (s, tn), 1) + j * tn
    d_ref[...] = jnp.where(col >= n_real, -jnp.inf, dist).astype(d_ref.dtype)

    # fused running row-min with self-exclusion (replaces torch's "=100" sentinel).
    excl = jnp.where((col == sid_ref[...]) | (col >= n_real), jnp.inf, dist)
    tile_min = jnp.min(excl, axis=1, keepdims=True)

    @pl.when(j == 0)
    def _():
        m_ref[...] = jnp.full(m_ref.shape, jnp.inf, dtype=jnp.float32)
    m_ref[...] = jnp.minimum(m_ref[...], tile_min)


def l1_distances(sampled_pe, pe_t, sample_ids_col, *, n_real, tile_n, binary):
    s_pad, n_enc = sampled_pe.shape
    n_pad = pe_t.shape[1]
    out_dt = jnp.bfloat16 if (binary and n_enc <= 256) else jnp.float32
    return pl.pallas_call(
        functools.partial(_dist_kernel, n_real=n_real, binary=binary, n_enc=n_enc),
        grid=(n_pad // tile_n,),
        in_specs=[
            _full_spec(sample_ids_col.shape),                 # [S, 1] int32
            _full_spec(sampled_pe.shape),                     # [S, E]
            pl.BlockSpec((n_enc, tile_n), lambda j: (0, j)),  # [E, TN] (pre-transposed)
        ],
        out_specs=[
            pl.BlockSpec((s_pad, tile_n), lambda j: (0, j)),  # dist tile (lane-dense)
            pl.BlockSpec((s_pad, 1), lambda j: (0, 0)),       # running min (resident)
        ],
        out_shape=[jax.ShapeDtypeStruct((s_pad, n_pad), out_dt),
                   jax.ShapeDtypeStruct((s_pad, 1), jnp.float32)],
        compiler_params=pltpu.CompilerParams(
            dimension_semantics=("arbitrary",)),   # running-min accumulator on N axis
    )(sample_ids_col, sampled_pe, pe_t)


# ---------------------------------------------------------------------------
# Kernel 3a: contrastive centers.  The positive mask is computed IN-KERNEL from the
# bf16 distances and the row-min (no dense f32 averaging matrix is ever built),
# accumulated over N tiles; normalize on the last step.  Note the 1/|positives|
# scale cancels in the L2 normalization, but we keep it for exact torch parity.
# ---------------------------------------------------------------------------
def _centers_kernel(d_ref, minv_ref, invc_ref, q_ref, c_ref, acc_ref):
    j = pl.program_id(0)

    @pl.when(j == 0)
    def _():
        acc_ref[...] = jnp.zeros_like(acc_ref)

    mask = (d_ref[...].astype(jnp.float32) == minv_ref[...]).astype(jnp.float32)
    acc_ref[...] += jnp.dot(mask, q_ref[...], preferred_element_type=jnp.float32)

    @pl.when(j == pl.num_programs(0) - 1)
    def _():
        c = acc_ref[...] * invc_ref[...]
        inv = jax.lax.rsqrt(
            jnp.maximum(jnp.sum(c * c, axis=1, keepdims=True), 1e-24))
        c_ref[...] = c * inv


def compute_centers(dist, min_val, inv_count, q_pad, *, tile_n):
    s_pad = dist.shape[0]
    n_pad, d = q_pad.shape
    return pl.pallas_call(
        _centers_kernel,
        grid=(n_pad // tile_n,),
        in_specs=[
            pl.BlockSpec((s_pad, tile_n), lambda j: (0, j)),
            _full_spec(min_val.shape),
            _full_spec(inv_count.shape),
            pl.BlockSpec((tile_n, d), lambda j: (j, 0)),
        ],
        out_specs=pl.BlockSpec((s_pad, d), lambda j: (0, 0)),
        out_shape=jax.ShapeDtypeStruct((s_pad, d), jnp.float32),
        scratch_shapes=[pltpu.VMEM((s_pad, d), jnp.float32)],
        compiler_params=pltpu.CompilerParams(
            dimension_semantics=("arbitrary",)),
    )(dist, min_val, inv_count, q_pad)


# ---------------------------------------------------------------------------
# Kernel 3b: similarity scores (1/T folded in), tiled over N with a PARALLEL axis
# (both TCs on v7x).  centers stays resident, q is streamed tile by tile.
# ---------------------------------------------------------------------------
def _scores_kernel(c_ref, q_ref, s_ref, *, inv_t):
    s_ref[...] = jax.lax.dot_general(
        c_ref[...], q_ref[...], (((1,), (1,)), ((), ())),
        preferred_element_type=jnp.float32) * inv_t


def compute_scores(centers, q_pad, *, inv_t, tile_n):
    s_pad, d = centers.shape
    n_pad = q_pad.shape[0]
    return pl.pallas_call(
        functools.partial(_scores_kernel, inv_t=float(inv_t)),
        grid=(n_pad // tile_n,),
        in_specs=[
            _full_spec(centers.shape),
            pl.BlockSpec((tile_n, d), lambda j: (j, 0)),
        ],
        out_specs=pl.BlockSpec((s_pad, tile_n), lambda j: (0, j)),
        out_shape=jax.ShapeDtypeStruct((s_pad, n_pad), jnp.float32),
        compiler_params=pltpu.CompilerParams(
            dimension_semantics=("parallel",)),
    )(centers, q_pad)


# ---------------------------------------------------------------------------
# Fully on-device portion of forward_wo (one jit; only the ragged final
# concatenation is host-side).
# ---------------------------------------------------------------------------
@functools.partial(
    jax.jit,
    static_argnames=("margin", "min_negative_size", "inv_t", "binary", "tm", "tile_n"))
def _device_forward(a_hat, node_x, pool, w1, b1, w2, b2, path_encoding, sample_ids,
                    *, margin, min_negative_size, inv_t, binary, tm, tile_n):
    n_nodes_pad = a_hat.shape[0]
    n_nodes = node_x.shape[0]
    x_pad = jnp.pad(node_x, ((0, n_nodes_pad - n_nodes), (0, 0))).astype(jnp.bfloat16)

    q = encoder_forward(a_hat, x_pad, pool, w1, b1, w2, b2, tm=tm)  # [G, D], L2-normed

    n = path_encoding.shape[0]
    e = path_encoding.shape[1]
    s = sample_ids.shape[0]
    s_pad = _round_up(s, 8)            # unmasked sublane-group stores on the hot kernel
    n_pad = _round_up(n, tile_n)       # no partial tiles / garbage columns anywhere
    k = min_negative_size

    enc_dt = jnp.bfloat16 if binary else jnp.float32
    ids_pad = jnp.pad(sample_ids, (0, s_pad - s))
    sampled_pe = jnp.take(path_encoding, ids_pad, axis=0).astype(enc_dt)   # [S_pad, E]
    pe_t = jnp.pad(jnp.transpose(path_encoding),
                   ((0, 0), (0, n_pad - n))).astype(enc_dt)                # [E, N_pad]
    sid_col = ids_pad[:, None].astype(jnp.int32)

    dist, min_val = l1_distances(sampled_pe, pe_t, sid_col,
                                 n_real=n, tile_n=tile_n, binary=binary)

    # masks directly on the (bf16) distances; dist already holds 0 at the self column
    # (matching torch's dist_vec[i]=0 restore) and -inf at padded columns.
    pos_mask = dist == min_val                      # includes self iff min==0 (== torch)
    neg_mask = dist >= (min_val + margin)
    pos_count = jnp.sum(pos_mask, axis=1)
    neg_count = jnp.sum(neg_mask, axis=1)
    inv_count = (1.0 / jnp.maximum(pos_count, 1).astype(jnp.float32))[:, None]

    q_pad = jnp.pad(q, ((0, n_pad - n), (0, 0)))    # requires G == N (asserted upstream)
    centers = compute_centers(dist, min_val, inv_count, q_pad, tile_n=tile_n)
    scores = compute_scores(centers, q_pad, inv_t=inv_t, tile_n=tile_n)     # [S_pad, N_pad]

    # first `min_negative_size` negatives in ascending index order (== torch q[mask][:K]):
    # cumsum rank + vectorized binary search instead of a sort-class top_k.
    rank = jnp.cumsum(neg_mask.astype(jnp.int32), axis=1)
    kvals = jnp.arange(1, k + 1, dtype=jnp.int32)
    neg_idx = jax.vmap(lambda r: jnp.searchsorted(r, kvals, side="left"))(rank)
    neg_idx = jnp.minimum(neg_idx, n_pad - 1).astype(jnp.int32)
    neg_scores = jnp.take_along_axis(scores, neg_idx, axis=1)               # [S_pad, K]

    row_valid = jnp.arange(s_pad) < s
    keep = (row_valid & (neg_count >= k) & (pos_count > 0)
            & ~jnp.any(jnp.isnan(centers), axis=1))
    return scores, centers, pos_mask, neg_scores, keep


# ---------------------------------------------------------------------------
# CCLNas port
# ---------------------------------------------------------------------------
class CCLNasPallas:
    """JAX/Pallas port of CCLNas.forward_wo.

    base_encoder is realized as a 1-layer mean-aggregation GNN + mean graph pooling +
    linear head (input_dim -> dim_fc -> dim_out); weights are initialized
    deterministically in-script.  `binary_encoding=True` (the NAS path-encoding case)
    enables the single-matmul MXU distance path.
    """

    def __init__(self, input_dim=6, dim_fc=64, dim_out=32, train_samples=500,
                 t=0.07, min_negative_size=4500, margin=2, seed=0,
                 binary_encoding=True, tile_n=2048):
        assert tile_n % 128 == 0
        self.T = t
        self.train_samples = train_samples
        self.min_negative_size = min_negative_size
        self.margin = margin
        self.binary_encoding = binary_encoding
        self.tile_n = tile_n
        k1, k2 = jax.random.split(jax.random.PRNGKey(seed + 1))
        self.w1 = (jax.random.normal(k1, (input_dim, dim_fc), jnp.float32)
                   * (1.0 / np.sqrt(input_dim)))
        self.b1 = jnp.zeros((1, dim_fc), jnp.float32)
        self.w2 = (jax.random.normal(k2, (dim_fc, dim_out), jnp.float32)
                   * (1.0 / np.sqrt(dim_fc)))
        self.b2 = jnp.zeros((1, dim_out), jnp.float32)

    @staticmethod
    def _graph_operators(num_nodes, edge_index, batch_idx, pad_to):
        # glue: dense normalized adjacency (+self loops) and mean-pool matrix, built
        # directly at the padded node count and in bf16 (no extra f32 HBM round trip
        # of the largest tensor).  Padded rows/cols stay zero -> zero contribution.
        a = np.zeros((pad_to, pad_to), np.float32)
        src, dst = np.asarray(edge_index)
        a[dst, src] = 1.0
        a[np.arange(num_nodes), np.arange(num_nodes)] += 1.0
        rowsum = a.sum(axis=1, keepdims=True)
        rowsum[rowsum == 0.0] = 1.0
        a /= rowsum
        num_graphs = int(np.max(batch_idx)) + 1
        p = np.zeros((num_graphs, pad_to), np.float32)
        p[np.asarray(batch_idx), np.arange(num_nodes)] = 1.0
        p /= p.sum(axis=1, keepdims=True)
        return (jnp.asarray(a, dtype=jnp.bfloat16),
                jnp.asarray(p, dtype=jnp.bfloat16))

    def forward(self, node_x, edge_index, batch_idx, path_encoding, sample_ids=None):
        num_nodes = node_x.shape[0]
        tm = 128 if num_nodes >= 128 else _round_up(num_nodes, 8)
        n_nodes_pad = _round_up(num_nodes, tm)
        a_hat, pool = self._graph_operators(num_nodes, edge_index, batch_idx,
                                            pad_to=n_nodes_pad)

        n_arch = path_encoding.shape[0]
        assert pool.shape[0] == n_arch, \
            "CCLNas requires one encoder output row per architecture (G == N)"

        if sample_ids is None:
            # original module random.shuffle()s; deterministic prefix here.
            sample_ids = list(range(n_arch))[: self.train_samples]
        sample_ids = jnp.asarray(sample_ids, jnp.int32)

        tile_n = max(128, min(self.tile_n, _round_up(n_arch, 128)))

        scores, centers, pos_mask, neg_scores, keep = _device_forward(
            a_hat, node_x, pool, self.w1, self.b1, self.w2, self.b2,
            jnp.asarray(path_encoding), sample_ids,
            margin=float(self.margin),
            min_negative_size=int(self.min_negative_size),
            inv_t=float(1.0 / self.T),
            binary=bool(self.binary_encoding),
            tm=int(tm), tile_n=int(tile_n))

        # Single D2H transfer; host side is only the ragged (data-dependent-shape)
        # concatenation that torch builds with its Python loop.
        scores_h, centers_h, pos_mask_h, neg_h, keep_h = jax.device_get(
            (scores, centers, pos_mask, neg_scores, keep))
        if not keep_h.any():
            raise RuntimeError("no sample satisfied the min_negative_size constraint")

        k = int(self.min_negative_size)
        logits_rows, center_rows = [], []
        for s_row in range(keep_h.shape[0]):
            if not keep_h[s_row]:
                continue
            pos_idx = np.nonzero(pos_mask_h[s_row])[0]
            pos = scores_h[s_row, pos_idx][:, None]                        # [P, 1]
            neg = np.broadcast_to(neg_h[s_row][None, :], (pos_idx.shape[0], k))
            logits_rows.append(np.concatenate([pos, neg], axis=1))         # already /T
            center_rows.append(centers_h[s_row][None, :])

        final_logits = jnp.asarray(np.concatenate(logits_rows, axis=0))
        final_center = jnp.asarray(np.concatenate(center_rows, axis=0))
        # TODO(synk): torch uses int64 ("long") labels; JAX default dtype is int32.
        label = jnp.zeros((final_logits.shape[0],), dtype=jnp.int32)
        return final_logits, label, final_center


if __name__ == "__main__":
    key = jax.random.PRNGKey(0)
    G = 32                    # number of architectures / graphs in the batch
    nodes_per_graph = 7       # NAS-Bench-like cell size
    input_dim, dim_fc, dim_out = 6, 64, 32
    E_pe = 16                 # path-encoding length
    N_nodes = G * nodes_per_graph

    k1, k2 = jax.random.split(key)
    node_x = jax.random.normal(k1, (N_nodes, input_dim), jnp.float32)
    path_encoding = jax.random.bernoulli(k2, 0.5, (G, E_pe)).astype(jnp.float32)

    # per-graph DAG: chain 0->1->...->6 plus skip 0->6
    edges = []
    for g in range(G):
        off = g * nodes_per_graph
        for v in range(nodes_per_graph - 1):
            edges.append((off + v, off + v + 1))
        edges.append((off, off + nodes_per_graph - 1))
    edge_index = np.asarray(edges, dtype=np.int32).T         # [2, E]
    batch_idx = np.repeat(np.arange(G, dtype=np.int32), nodes_per_graph)

    model = CCLNasPallas(input_dim=input_dim, dim_fc=dim_fc, dim_out=dim_out,
                         train_samples=500, t=0.07, min_negative_size=4,
                         margin=2, seed=0, binary_encoding=True)
    sample_ids = list(range(G))   # deterministic (module shuffles if None)

    logits, label, centers = model.forward(node_x, edge_index, batch_idx,
                                           path_encoding, sample_ids=sample_ids)
    jax.block_until_ready((logits, label, centers))
    print("KERNEL_OK")
</pallas_src>

<mosaic_0001>
module attributes {stable_mosaic.version = 11 : i64} {
  func.func @_dist_kernel(%arg0: i32, %arg1: memref<32x1xi32, #tpu.memory_space<vmem>>, %arg2: memref<32x16xbf16, #tpu.memory_space<vmem>>, %arg3: memref<16x128xbf16, #tpu.memory_space<vmem>>, %arg4: memref<32x128xbf16, #tpu.memory_space<vmem>>, %arg5: memref<32x1xf32, #tpu.memory_space<vmem>>) attributes {dimension_semantics = [#tpu.dimension_semantics<arbitrary>], iteration_bounds = array<i64: 1>, scalar_prefetch = 0 : i64, scratch_operands = 0 : i64, tpu.core_type = #tpu.core_type<tc>, window_params = [{pipeline_mode = #tpu.pipeline_mode<synchronous>, transform_indices = @transform_0, window_bounds = array<i64: 32, 1>}, {pipeline_mode = #tpu.pipeline_mode<synchronous>, transform_indices = @transform_1, window_bounds = array<i64: 32, 16>}, {transform_indices = @transform_2, window_bounds = array<i64: 16, 128>}, {transform_indices = @transform_3, window_bounds = array<i64: 32, 128>}, {pipeline_mode = #tpu.pipeline_mode<synchronous>, transform_indices = @transform_4, window_bounds = array<i64: 32, 1>}]} {
    %c0 = arith.constant 0 : index
    %c0_0 = arith.constant 0 : index
    %0 = vector.load %arg2[%c0, %c0_0] : memref<32x16xbf16, #tpu.memory_space<vmem>>, vector<32x16xbf16>
    %c0_1 = arith.constant 0 : index
    %c0_2 = arith.constant 0 : index
    %1 = vector.load %arg3[%c0_1, %c0_2] : memref<16x128xbf16, #tpu.memory_space<vmem>>, vector<16x128xbf16>
    %cst = arith.constant dense<0.000000e+00> : vector<32x128xf32>
    %2 = tpu.matmul %0, %1, %cst {dimension_numbers = #tpu.dot_dimension_numbers<[1], [0], [0], [1], [0, 0, 1, 1], [], []>} : vector<32x16xbf16>, vector<16x128xbf16>, vector<32x128xf32> -> vector<32x128xf32>
    %3 = arith.extf %0 : vector<32x16xbf16> to vector<32x16xf32>
    %cst_3 = arith.constant dense<0.000000e+00> : vector<32xf32>
    %4 = vector.multi_reduction <add>, %3, %cst_3 [1] : vector<32x16xf32> to vector<32xf32>
    %5 = vector.shape_cast %4 : vector<32xf32> to vector<32x1xf32>
    %6 = arith.extf %1 : vector<16x128xbf16> to vector<16x128xf32>
    %cst_4 = arith.constant dense<0.000000e+00> : vector<128xf32>
    %7 = vector.multi_reduction <add>, %6, %cst_4 [0] : vector<16x128xf32> to vector<128xf32>
    %8 = vector.shape_cast %7 : vector<128xf32> to vector<1x128xf32>
    %9 = vector.broadcast %5 : vector<32x1xf32> to vector<32x128xf32>
    %10 = vector.broadcast %8 : vector<1x128xf32> to vector<32x128xf32>
    %11 = arith.addf %9, %10 : vector<32x128xf32>
    %cst_5 = arith.constant 2.000000e+00 : f32
    %12 = vector.broadcast %cst_5 : f32 to vector<32x128xf32>
    %13 = arith.mulf %12, %2 : vector<32x128xf32>
    %14 = arith.subf %11, %13 : vector<32x128xf32>
    %15 = tpu.iota {dimensions = array<i32: 1>} : vector<32x128xi32>
    %c128_i32 = arith.constant 128 : i32
    %16 = arith.muli %arg0, %c128_i32 : i32
    %17 = vector.broadcast %16 : i32 to vector<32x128xi32>
    %18 = arith.addi %15, %17 : vector<32x128xi32>
    %c32_i32 = arith.constant 32 : i32
    %19 = vector.broadcast %c32_i32 : i32 to vector<32x128xi32>
    %20 = arith.cmpi sge, %18, %19 : vector<32x128xi32>
    %cst_6 = arith.constant 0xFF800000 : f32
    %21 = vector.broadcast %cst_6 : f32 to vector<32x128xf32>
    %22 = arith.select %20, %21, %14 : vector<32x128xi1>, vector<32x128xf32>
    %23 = arith.truncf %22 : vector<32x128xf32> to vector<32x128xbf16>
    %c0_7 = arith.constant 0 : index
    %c0_8 = arith.constant 0 : index
    %24 = vector.load %arg4[%c0_7, %c0_8] : memref<32x128xbf16, #tpu.memory_space<vmem>>, vector<32x128xbf16>
    tpu.vector_store %arg4[%c0_7, %c0_8], %23 {strides = array<i32>} : memref<32x128xbf16, #tpu.memory_space<vmem>>, vector<32x128xbf16>,
    %c0_9 = arith.constant 0 : index
    %c0_10 = arith.constant 0 : index
    %25 = vector.load %arg1[%c0_9, %c0_10] : memref<32x1xi32, #tpu.memory_space<vmem>>, vector<32x1xi32>
    %26 = vector.broadcast %25 : vector<32x1xi32> to vector<32x128xi32>
    %27 = arith.cmpi eq, %18, %26 : vector<32x128xi32>
    %c32_i32_11 = arith.constant 32 : i32
    %28 = vector.broadcast %c32_i32_11 : i32 to vector<32x128xi32>
    %29 = arith.cmpi sge, %18, %28 : vector<32x128xi32>
    %30 = arith.ori %27, %29 : vector<32x128xi1>
    %cst_12 = arith.constant 0x7F800000 : f32
    %31 = vector.broadcast %cst_12 : f32 to vector<32x128xf32>
    %32 = arith.select %30, %31, %14 : vector<32x128xi1>, vector<32x128xf32>
    %cst_13 = arith.constant dense<0x7F800000> : vector<32xf32>
    %33 = vector.multi_reduction <minimumf>, %32, %cst_13 [1] : vector<32x128xf32> to vector<32xf32>
    %34 = vector.shape_cast %33 : vector<32xf32> to vector<32x1xf32>
    %c0_i32 = arith.constant 0 : i32
    %35 = arith.cmpi eq, %arg0, %c0_i32 : i32
    %36 = arith.extui %35 : i1 to i32
    %c0_i32_14 = arith.constant 0 : i32
    %37 = arith.cmpi ne, %36, %c0_i32_14 : i32
    scf.if %37 {
      %cst_19 = arith.constant 0x7F800000 : f32
      %41 = vector.broadcast %cst_19 : f32 to vector<32x1xf32>
      %c0_20 = arith.constant 0 : index
      %c0_21 = arith.constant 0 : index
      %42 = vector.load %arg5[%c0_20, %c0_21] : memref<32x1xf32, #tpu.memory_space<vmem>>, vector<32x1xf32>
      tpu.vector_store %arg5[%c0_20, %c0_21], %41 {strides = array<i32>} : memref<32x1xf32, #tpu.memory_space<vmem>>, vector<32x1xf32>,
    } else {
    }
    %c0_15 = arith.constant 0 : index
    %c0_16 = arith.constant 0 : index
    %38 = vector.load %arg5[%c0_15, %c0_16] : memref<32x1xf32, #tpu.memory_space<vmem>>, vector<32x1xf32>
    %39 = arith.minimumf %38, %34 : vector<32x1xf32>
    %c0_17 = arith.constant 0 : index
    %c0_18 = arith.constant 0 : index
    %40 = vector.load %arg5[%c0_17, %c0_18] : memref<32x1xf32, #tpu.memory_space<vmem>>, vector<32x1xf32>
    tpu.vector_store %arg5[%c0_17, %c0_18], %39 {strides = array<i32>} : memref<32x1xf32, #tpu.memory_space<vmem>>, vector<32x1xf32>,
    return
  }
  func.func @transform_0(%arg0: i32) -> (i32, i32) {
    %c0_i32 = arith.constant 0 : i32
    %c0_i32_0 = arith.constant 0 : i32
    %c0_i32_1 = arith.constant 0 : i32
    return %c0_i32, %c0_i32_0 : i32, i32
  }
  func.func @transform_1(%arg0: i32) -> (i32, i32) {
    %c0_i32 = arith.constant 0 : i32
    %c0_i32_0 = arith.constant 0 : i32
    %c0_i32_1 = arith.constant 0 : i32
    return %c0_i32, %c0_i32_0 : i32, i32
  }
  func.func @transform_2(%arg0: i32) -> (i32, i32) {
    %c0_i32 = arith.constant 0 : i32
    %c0_i32_0 = arith.constant 0 : i32
    return %c0_i32, %arg0 : i32, i32
  }
  func.func @transform_3(%arg0: i32) -> (i32, i32) {
    %c0_i32 = arith.constant 0 : i32
    %c0_i32_0 = arith.constant 0 : i32
    return %c0_i32, %arg0 : i32, i32
  }
  func.func @transform_4(%arg0: i32) -> (i32, i32) {
    %c0_i32 = arith.constant 0 : i32
    %c0_i32_0 = arith.constant 0 : i32
    %c0_i32_1 = arith.constant 0 : i32
    return %c0_i32, %c0_i32_0 : i32, i32
  }
}

module attributes {stable_mosaic.version = 11 : i64} {
  func.func @_encoder_kernel(%arg0: i32, %arg1: memref<128x256xbf16, #tpu.memory_space<vmem>>, %arg2: memref<256x6xbf16, #tpu.memory_space<vmem>>, %arg3: memref<32x128xbf16, #tpu.memory_space<vmem>>, %arg4: memref<6x64xf32, #tpu.memory_space<vmem>>, %arg5: memref<1x64xf32, #tpu.memory_space<vmem>>, %arg6: memref<64x32xf32, #tpu.memory_space<vmem>>, %arg7: memref<1x32xf32, #tpu.memory_space<vmem>>, %arg8: memref<32x32xf32, #tpu.memory_space<vmem>>, %arg9: memref<32x64xf32, #tpu.memory_space<vmem>>) attributes {dimension_semantics = [#tpu.dimension_semantics<arbitrary>], iteration_bounds = array<i64: 2>, scalar_prefetch = 0 : i64, scratch_operands = 1 : i64, tpu.core_type = #tpu.core_type<tc>, window_params = [{transform_indices = @transform_0, window_bounds = array<i64: 128, 256>}, {pipeline_mode = #tpu.pipeline_mode<synchronous>, transform_indices = @transform_1, window_bounds = array<i64: 256, 6>}, {transform_indices = @transform_2, window_bounds = array<i64: 32, 128>}, {pipeline_mode = #tpu.pipeline_mode<synchronous>, transform_indices = @transform_3, window_bounds = array<i64: 6, 64>}, {pipeline_mode = #tpu.pipeline_mode<synchronous>, transform_indices = @transform_4, window_bounds = array<i64: 1, 64>}, {pipeline_mode = #tpu.pipeline_mode<synchronous>, transform_indices = @transform_5, window_bounds = array<i64: 64, 32>}, {pipeline_mode = #tpu.pipeline_mode<synchronous>, transform_indices = @transform_6, window_bounds = array<i64: 1, 32>}, {pipeline_mode = #tpu.pipeline_mode<synchronous>, transform_indices = @transform_7, window_bounds = array<i64: 32, 32>}]} {
    %c0_i32 = arith.constant 0 : i32
    %0 = arith.cmpi eq, %arg0, %c0_i32 : i32
    %1 = arith.extui %0 : i1 to i32
    %c0_i32_0 = arith.constant 0 : i32
    %2 = arith.cmpi ne, %1, %c0_i32_0 : i32
    scf.if %2 {
      %cst_18 = arith.constant 0.000000e+00 : f32
      %22 = vector.broadcast %cst_18 : f32 to vector<32x64xf32>
      %c0_19 = arith.constant 0 : index
      %c0_20 = arith.constant 0 : index
      %23 = vector.load %arg9[%c0_19, %c0_20] : memref<32x64xf32, #tpu.memory_space<vmem>>, vector<32x64xf32>
      tpu.vector_store %arg9[%c0_19, %c0_20], %22 {strides = array<i32>} : memref<32x64xf32, #tpu.memory_space<vmem>>, vector<32x64xf32>,
    } else {
    }
    %c0 = arith.constant 0 : index
    %c0_1 = arith.constant 0 : index
    %3 = vector.load %arg1[%c0, %c0_1] : memref<128x256xbf16, #tpu.memory_space<vmem>>, vector<128x256xbf16>
    %c0_2 = arith.constant 0 : index
    %c0_3 = arith.constant 0 : index
    %4 = vector.load %arg2[%c0_2, %c0_3] : memref<256x6xbf16, #tpu.memory_space<vmem>>, vector<256x6xbf16>
    %cst = arith.constant dense<0.000000e+00> : vector<128x6xf32>
    %5 = tpu.matmul %3, %4, %cst {dimension_numbers = #tpu.dot_dimension_numbers<[1], [0], [0], [1], [0, 0, 1, 1], [], []>} : vector<128x256xbf16>, vector<256x6xbf16>, vector<128x6xf32> -> vector<128x6xf32>
    %c0_4 = arith.constant 0 : index
    %c0_5 = arith.constant 0 : index
    %6 = vector.load %arg4[%c0_4, %c0_5] : memref<6x64xf32, #tpu.memory_space<vmem>>, vector<6x64xf32>
    %cst_6 = arith.constant dense<0.000000e+00> : vector<128x64xf32>
    %7 = tpu.matmul %5, %6, %cst_6 {dimension_numbers = #tpu.dot_dimension_numbers<[1], [0], [0], [1], [0, 0, 1, 1], [], []>} : vector<128x6xf32>, vector<6x64xf32>, vector<128x64xf32> -> vector<128x64xf32>
    %c0_7 = arith.constant 0 : index
    %c0_8 = arith.constant 0 : index
    %8 = vector.load %arg5[%c0_7, %c0_8] : memref<1x64xf32, #tpu.memory_space<vmem>>, vector<1x64xf32>
    %9 = vector.broadcast %8 : vector<1x64xf32> to vector<128x64xf32>
    %10 = arith.addf %7, %9 : vector<128x64xf32>
    %cst_9 = arith.constant 0.000000e+00 : f32
    %11 = vector.broadcast %cst_9 : f32 to vector<128x64xf32>
    %12 = arith.maximumf %10, %11 : vector<128x64xf32>
    %c0_10 = arith.constant 0 : index
    %c0_11 = arith.constant 0 : index
    %13 = vector.load %arg9[%c0_10, %c0_11] : memref<32x64xf32, #tpu.memory_space<vmem>>, vector<32x64xf32>
    %c0_12 = arith.constant 0 : index
    %c0_13 = arith.constant 0 : index
    %14 = vector.load %arg3[%c0_12, %c0_13] : memref<32x128xbf16, #tpu.memory_space<vmem>>, vector<32x128xbf16>
    %15 = arith.extf %14 : vector<32x128xbf16> to vector<32x128xf32>
    %cst_14 = arith.constant dense<0.000000e+00> : vector<32x64xf32>
    %16 = tpu.matmul %15, %12, %cst_14 {dimension_numbers = #tpu.dot_dimension_numbers<[1], [0], [0], [1], [0, 0, 1, 1], [], []>} : vector<32x128xf32>, vector<128x64xf32>, vector<32x64xf32> -> vector<32x64xf32>
    %17 = arith.addf %13, %16 : vector<32x64xf32>
    %c0_15 = arith.constant 0 : index
    %c0_16 = arith.constant 0 : index
    %18 = vector.load %arg9[%c0_15, %c0_16] : memref<32x64xf32, #tpu.memory_space<vmem>>, vector<32x64xf32>
    tpu.vector_store %arg9[%c0_15, %c0_16], %17 {strides = array<i32>} : memref<32x64xf32, #tpu.memory_space<vmem>>, vector<32x64xf32>,
    %c1_i32 = arith.constant 1 : i32
    %19 = arith.cmpi eq, %arg0, %c1_i32 : i32
    %20 = arith.extui %19 : i1 to i32
    %c0_i32_17 = arith.constant 0 : i32
    %21 = arith.cmpi ne, %20, %c0_i32_17 : i32
    scf.if %21 {
      %c0_18 = arith.constant 0 : index
      %c0_19 = arith.constant 0 : index
      %22 = vector.load %arg9[%c0_18, %c0_19] : memref<32x64xf32, #tpu.memory_space<vmem>>, vector<32x64xf32>
      %c0_20 = arith.constant 0 : index
      %c0_21 = arith.constant 0 : index
      %23 = vector.load %arg6[%c0_20, %c0_21] : memref<64x32xf32, #tpu.memory_space<vmem>>, vector<64x32xf32>
      %cst_22 = arith.constant dense<0.000000e+00> : vector<32x32xf32>
      %24 = tpu.matmul %22, %23, %cst_22 {dimension_numbers = #tpu.dot_dimension_numbers<[1], [0], [0], [1], [0, 0, 1, 1], [], []>} : vector<32x64xf32>, vector<64x32xf32>, vector<32x32xf32> -> vector<32x32xf32>
      %c0_23 = arith.constant 0 : index
      %c0_24 = arith.constant 0 : index
      %25 = vector.load %arg7[%c0_23, %c0_24] : memref<1x32xf32, #tpu.memory_space<vmem>>, vector<1x32xf32>
      %26 = vector.broadcast %25 : vector<1x32xf32> to vector<32x32xf32>
      %27 = arith.addf %24, %26 : vector<32x32xf32>
      %28 = arith.mulf %27, %27 : vector<32x32xf32>
      %cst_25 = arith.constant dense<0.000000e+00> : vector<32xf32>
      %29 = vector.multi_reduction <add>, %28, %cst_25 [1] : vector<32x32xf32> to vector<32xf32>
      %30 = vector.shape_cast %29 : vector<32xf32> to vector<32x1xf32>
      %cst_26 = arith.constant 1.000000e-24 : f32
      %31 = vector.broadcast %cst_26 : f32 to vector<32x1xf32>
      %32 = arith.maximumf %30, %31 : vector<32x1xf32>
      %33 = math.rsqrt %32 : vector<32x1xf32>
      %34 = vector.broadcast %33 : vector<32x1xf32> to vector<32x32xf32>
      %35 = arith.mulf %27, %34 : vector<32x32xf32>
      %c0_27 = arith.constant 0 : index
      %c0_28 = arith.constant 0 : index
      %36 = vector.load %arg8[%c0_27, %c0_28] : memref<32x32xf32, #tpu.memory_space<vmem>>, vector<32x32xf32>
      tpu.vector_store %arg8[%c0_27, %c0_28], %35 {strides = array<i32>} : memref<32x32xf32, #tpu.memory_space<vmem>>, vector<32x32xf32>,
    } else {
    }
    return
  }
  func.func @transform_0(%arg0: i32) -> (i32, i32) {
    %c0_i32 = arith.constant 0 : i32
    %c0_i32_0 = arith.constant 0 : i32
    return %arg0, %c0_i32 : i32, i32
  }
  func.func @transform_1(%arg0: i32) -> (i32, i32) {
    %c0_i32 = arith.constant 0 : i32
    %c0_i32_0 = arith.constant 0 : i32
    %c0_i32_1 = arith.constant 0 : i32
    return %c0_i32, %c0_i32_0 : i32, i32
  }
  func.func @transform_2(%arg0: i32) -> (i32, i32) {
    %c0_i32 = arith.constant 0 : i32
    %c0_i32_0 = arith.constant 0 : i32
    return %c0_i32, %arg0 : i32, i32
  }
  func.func @transform_3(%arg0: i32) -> (i32, i32) {
    %c0_i32 = arith.constant 0 : i32
    %c0_i32_0 = arith.constant 0 : i32
    %c0_i32_1 = arith.constant 0 : i32
    return %c0_i32, %c0_i32_0 : i32, i32
  }
  func.func @transform_4(%arg0: i32) -> (i32, i32) {
    %c0_i32 = arith.constant 0 : i32
    %c0_i32_0 = arith.constant 0 : i32
    %c0_i32_1 = arith.constant 0 : i32
    return %c0_i32, %c0_i32_0 : i32, i32
  }
  func.func @transform_5(%arg0: i32) -> (i32, i32) {
    %c0_i32 = arith.constant 0 : i32
    %c0_i32_0 = arith.constant 0 : i32
    %c0_i32_1 = arith.constant 0 : i32
    return %c0_i32, %c0_i32_0 : i32, i32
  }
  func.func @transform_6(%arg0: i32) -> (i32, i32) {
    %c0_i32 = arith.constant 0 : i32
    %c0_i32_0 = arith.constant 0 : i32
    %c0_i32_1 = arith.constant 0 : i32
    return %c0_i32, %c0_i32_0 : i32, i32
  }
  func.func @transform_7(%arg0: i32) -> (i32, i32) {
    %c0_i32 = arith.constant 0 : i32
    %c0_i32_0 = arith.constant 0 : i32
    %c0_i32_1 = arith.constant 0 : i32
    return %c0_i32, %c0_i32_0 : i32, i32
  }
}

module attributes {stable_mosaic.version = 11 : i64} {
  func.func @_centers_kernel(%arg0: i32, %arg1: memref<32x128xbf16, #tpu.memory_space<vmem>>, %arg2: memref<32x1xf32, #tpu.memory_space<vmem>>, %arg3: memref<32x1xf32, #tpu.memory_space<vmem>>, %arg4: memref<128x32xf32, #tpu.memory_space<vmem>>, %arg5: memref<32x32xf32, #tpu.memory_space<vmem>>, %arg6: memref<32x32xf32, #tpu.memory_space<vmem>>) attributes {dimension_semantics = [#tpu.dimension_semantics<arbitrary>], iteration_bounds = array<i64: 1>, scalar_prefetch = 0 : i64, scratch_operands = 1 : i64, tpu.core_type = #tpu.core_type<tc>, window_params = [{transform_indices = @transform_0, window_bounds = array<i64: 32, 128>}, {pipeline_mode = #tpu.pipeline_mode<synchronous>, transform_indices = @transform_1, window_bounds = array<i64: 32, 1>}, {pipeline_mode = #tpu.pipeline_mode<synchronous>, transform_indices = @transform_2, window_bounds = array<i64: 32, 1>}, {transform_indices = @transform_3, window_bounds = array<i64: 128, 32>}, {pipeline_mode = #tpu.pipeline_mode<synchronous>, transform_indices = @transform_4, window_bounds = array<i64: 32, 32>}]} {
    %c0_i32 = arith.constant 0 : i32
    %0 = arith.cmpi eq, %arg0, %c0_i32 : i32
    %1 = arith.extui %0 : i1 to i32
    %c0_i32_0 = arith.constant 0 : i32
    %2 = arith.cmpi ne, %1, %c0_i32_0 : i32
    scf.if %2 {
      %cst_12 = arith.constant 0.000000e+00 : f32
      %18 = vector.broadcast %cst_12 : f32 to vector<32x32xf32>
      %c0_13 = arith.constant 0 : index
      %c0_14 = arith.constant 0 : index
      %19 = vector.load %arg6[%c0_13, %c0_14] : memref<32x32xf32, #tpu.memory_space<vmem>>, vector<32x32xf32>
      tpu.vector_store %arg6[%c0_13, %c0_14], %18 {strides = array<i32>} : memref<32x32xf32, #tpu.memory_space<vmem>>, vector<32x32xf32>,
    } else {
    }
    %c0 = arith.constant 0 : index
    %c0_1 = arith.constant 0 : index
    %3 = vector.load %arg1[%c0, %c0_1] : memref<32x128xbf16, #tpu.memory_space<vmem>>, vector<32x128xbf16>
    %4 = arith.extf %3 : vector<32x128xbf16> to vector<32x128xf32>
    %c0_2 = arith.constant 0 : index
    %c0_3 = arith.constant 0 : index
    %5 = vector.load %arg2[%c0_2, %c0_3] : memref<32x1xf32, #tpu.memory_space<vmem>>, vector<32x1xf32>
    %6 = vector.broadcast %5 : vector<32x1xf32> to vector<32x128xf32>
    %7 = arith.cmpf oeq, %4, %6 : vector<32x128xf32>
    %8 = arith.extui %7 : vector<32x128xi1> to vector<32x128xi32>
    %9 = arith.sitofp %8 : vector<32x128xi32> to vector<32x128xf32>
    %c0_4 = arith.constant 0 : index
    %c0_5 = arith.constant 0 : index
    %10 = vector.load %arg6[%c0_4, %c0_5] : memref<32x32xf32, #tpu.memory_space<vmem>>, vector<32x32xf32>
    %c0_6 = arith.constant 0 : index
    %c0_7 = arith.constant 0 : index
    %11 = vector.load %arg4[%c0_6, %c0_7] : memref<128x32xf32, #tpu.memory_space<vmem>>, vector<128x32xf32>
    %cst = arith.constant dense<0.000000e+00> : vector<32x32xf32>
    %12 = tpu.matmul %9, %11, %cst {dimension_numbers = #tpu.dot_dimension_numbers<[1], [0], [0], [1], [0, 0, 1, 1], [], []>} : vector<32x128xf32>, vector<128x32xf32>, vector<32x32xf32> -> vector<32x32xf32>
    %13 = arith.addf %10, %12 : vector<32x32xf32>
    %c0_8 = arith.constant 0 : index
    %c0_9 = arith.constant 0 : index
    %14 = vector.load %arg6[%c0_8, %c0_9] : memref<32x32xf32, #tpu.memory_space<vmem>>, vector<32x32xf32>
    tpu.vector_store %arg6[%c0_8, %c0_9], %13 {strides = array<i32>} : memref<32x32xf32, #tpu.memory_space<vmem>>, vector<32x32xf32>,
    %c0_i32_10 = arith.constant 0 : i32
    %15 = arith.cmpi eq, %arg0, %c0_i32_10 : i32
    %16 = arith.extui %15 : i1 to i32
    %c0_i32_11 = arith.constant 0 : i32
    %17 = arith.cmpi ne, %16, %c0_i32_11 : i32
    scf.if %17 {
      %c0_12 = arith.constant 0 : index
      %c0_13 = arith.constant 0 : index
      %18 = vector.load %arg6[%c0_12, %c0_13] : memref<32x32xf32, #tpu.memory_space<vmem>>, vector<32x32xf32>
      %c0_14 = arith.constant 0 : index
      %c0_15 = arith.constant 0 : index
      %19 = vector.load %arg3[%c0_14, %c0_15] : memref<32x1xf32, #tpu.memory_space<vmem>>, vector<32x1xf32>
      %20 = vector.broadcast %19 : vector<32x1xf32> to vector<32x32xf32>
      %21 = arith.mulf %18, %20 : vector<32x32xf32>
      %22 = arith.mulf %21, %21 : vector<32x32xf32>
      %cst_16 = arith.constant dense<0.000000e+00> : vector<32xf32>
      %23 = vector.multi_reduction <add>, %22, %cst_16 [1] : vector<32x32xf32> to vector<32xf32>
      %24 = vector.shape_cast %23 : vector<32xf32> to vector<32x1xf32>
      %cst_17 = arith.constant 1.000000e-24 : f32
      %25 = vector.broadcast %cst_17 : f32 to vector<32x1xf32>
      %26 = arith.maximumf %24, %25 : vector<32x1xf32>
      %27 = math.rsqrt %26 : vector<32x1xf32>
      %28 = vector.broadcast %27 : vector<32x1xf32> to vector<32x32xf32>
      %29 = arith.mulf %21, %28 : vector<32x32xf32>
      %c0_18 = arith.constant 0 : index
      %c0_19 = arith.constant 0 : index
      %30 = vector.load %arg5[%c0_18, %c0_19] : memref<32x32xf32, #tpu.memory_space<vmem>>, vector<32x32xf32>
      tpu.vector_store %arg5[%c0_18, %c0_19], %29 {strides = array<i32>} : memref<32x32xf32, #tpu.memory_space<vmem>>, vector<32x32xf32>,
    } else {
    }
    return
  }
  func.func @transform_0(%arg0: i32) -> (i32, i32) {
    %c0_i32 = arith.constant 0 : i32
    %c0_i32_0 = arith.constant 0 : i32
    return %c0_i32, %arg0 : i32, i32
  }
  func.func @transform_1(%arg0: i32) -> (i32, i32) {
    %c0_i32 = arith.constant 0 : i32
    %c0_i32_0 = arith.constant 0 : i32
    %c0_i32_1 = arith.constant 0 : i32
    return %c0_i32, %c0_i32_0 : i32, i32
  }
  func.func @transform_2(%arg0: i32) -> (i32, i32) {
    %c0_i32 = arith.constant 0 : i32
    %c0_i32_0 = arith.constant 0 : i32
    %c0_i32_1 = arith.constant 0 : i32
    return %c0_i32, %c0_i32_0 : i32, i32
  }
  func.func @transform_3(%arg0: i32) -> (i32, i32) {
    %c0_i32 = arith.constant 0 : i32
    %c0_i32_0 = arith.constant 0 : i32
    return %arg0, %c0_i32 : i32, i32
  }
  func.func @transform_4(%arg0: i32) -> (i32, i32) {
    %c0_i32 = arith.constant 0 : i32
    %c0_i32_0 = arith.constant 0 : i32
    %c0_i32_1 = arith.constant 0 : i32
    return %c0_i32, %c0_i32_0 : i32, i32
  }
}

module attributes {stable_mosaic.version = 11 : i64} {
  func.func @_scores_kernel(%arg0: i32, %arg1: memref<32x32xf32, #tpu.memory_space<vmem>>, %arg2: memref<128x32xf32, #tpu.memory_space<vmem>>, %arg3: memref<32x128xf32, #tpu.memory_space<vmem>>) attributes {dimension_semantics = [#tpu.dimension_semantics<parallel>], iteration_bounds = array<i64: 1>, scalar_prefetch = 0 : i64, scratch_operands = 0 : i64, tpu.core_type = #tpu.core_type<tc>, window_params = [{pipeline_mode = #tpu.pipeline_mode<synchronous>, transform_indices = @transform_0, window_bounds = array<i64: 32, 32>}, {transform_indices = @transform_1, window_bounds = array<i64: 128, 32>}, {transform_indices = @transform_2, window_bounds = array<i64: 32, 128>}]} {
    %c0 = arith.constant 0 : index
    %c0_0 = arith.constant 0 : index
    %0 = vector.load %arg1[%c0, %c0_0] : memref<32x32xf32, #tpu.memory_space<vmem>>, vector<32x32xf32>
    %c0_1 = arith.constant 0 : index
    %c0_2 = arith.constant 0 : index
    %1 = vector.load %arg2[%c0_1, %c0_2] : memref<128x32xf32, #tpu.memory_space<vmem>>, vector<128x32xf32>
    %cst = arith.constant dense<0.000000e+00> : vector<32x128xf32>
    %2 = tpu.matmul %0, %1, %cst {dimension_numbers = #tpu.dot_dimension_numbers<[1], [1], [0], [0], [0, 0, 1, 0], [], []>} : vector<32x32xf32>, vector<128x32xf32>, vector<32x128xf32> -> vector<32x128xf32>
    %cst_3 = arith.constant 14.2857141 : f32
    %3 = vector.broadcast %cst_3 : f32 to vector<32x128xf32>
    %4 = arith.mulf %2, %3 : vector<32x128xf32>
    %c0_4 = arith.constant 0 : index
    %c0_5 = arith.constant 0 : index
    %5 = vector.load %arg3[%c0_4, %c0_5] : memref<32x128xf32, #tpu.memory_space<vmem>>, vector<32x128xf32>
    tpu.vector_store %arg3[%c0_4, %c0_5], %4 {strides = array<i32>} : memref<32x128xf32, #tpu.memory_space<vmem>>, vector<32x128xf32>,
    return
  }
  func.func @transform_0(%arg0: i32) -> (i32, i32) {
    %c0_i32 = arith.constant 0 : i32
    %c0_i32_0 = arith.constant 0 : i32
    %c0_i32_1 = arith.constant 0 : i32
    return %c0_i32, %c0_i32_0 : i32, i32
  }
  func.func @transform_1(%arg0: i32) -> (i32, i32) {
    %c0_i32 = arith.constant 0 : i32
    %c0_i32_0 = arith.constant 0 : i32
    return %arg0, %c0_i32 : i32, i32
  }
  func.func @transform_2(%arg0: i32) -> (i32, i32) {
    %c0_i32 = arith.constant 0 : i32
    %c0_i32_0 = arith.constant 0 : i32
    return %c0_i32, %arg0 : i32, i32
  }
}

</mosaic_0001>

<llo_original>
// kernel: _device_forward.5
$region0: #{_device_forward.5}
  #allocation0 [shape = 'u32[]', space=smem, size = 0x4, offset = 0x4, fixed_abs, tag = 'smem constant byte address 0x4 - core index']
  #allocation1 [shape = 'u32[144,128]{1,0:T(1,128)}', space=vmem, size = 0x12000, scoped, tag = 'internal scratch']
  %s0 = inlined_call_operand.vmem [shape: s32[32,1], index: 0, kind: input, shape index: {}]
  %s1 = inlined_call_operand.vmem [shape: bf16[32,16], index: 1, kind: input, shape index: {}]
  %s2 = inlined_call_operand.vmem [shape: bf16[16,128], index: 2, kind: input, shape index: {}]
  %s3 = inlined_call_operand.vmem [shape: bf16[32,128], index: 3, kind: output, shape index: {0}]
  %s4 = inlined_call_operand.vmem [shape: f32[32,1], index: 4, kind: output, shape index: {1}]
  %5 = xla_tuple %s3, %s4
  %s6 = sld [smem:[#allocation0]]
  $region34: #{_device_forward.5} parent=0
    _
  %s8 = ssub.s32 1, %s6
  %s9 = scalar_select 0, %s8, %s6
  // Predicated region
  $region2: #{_device_forward.5} parent=0 // pred_check
    _
  $region3: #{_device_forward.5} parent=0 // pred_check_branch
    %11 = sbr.rel (0) target = $region5
  $region4: #{_device_forward.5} parent=0 // pred_region
    _
  $region5: #{_device_forward.5} parent=0 // pred_fallthru
    _
  // Predicated region
  $region6: #{_device_forward.5} parent=0 // pred_check
    _
  $region7: #{_device_forward.5} parent=0 // pred_check_branch
    %13 = sbr.rel (0) target = $region9
  $region8: #{_device_forward.5} parent=0 // pred_region
    _
  $region9: #{_device_forward.5} parent=0 // pred_fallthru
    _
  // Predicated region
  $region10: #{_device_forward.5} parent=0 // pred_check
    _
  $region11: #{_device_forward.5} parent=0 // pred_check_branch
    %15 = sbr.rel (0) target = $region13
  $region12: #{_device_forward.5} parent=0 // pred_region
    _
  $region13: #{_device_forward.5} parent=0 // pred_fallthru
    _
  %v17 = vld [vmem:[%s1] sm:$0xf]
  %v18 = vld [vmem:[%s1 + $0x4] sm:$0xf]
  %v19 = vld [vmem:[%s1 + $0x8] sm:$0xf]
  %v20 = vld [vmem:[%s1 + $0xc] sm:$0xf]
  %v21 = vld [vmem:[%s2] sm:$0xf]
  %v22 = vld [vmem:[%s2 + $0x4] sm:$0xf]
  %v27 = vunpack.c.l.b16 %v17
  %v28 = vunpack.c.l.b16 %v18
  %v29 = vunpack.c.l.b16 %v19
  %v30 = vunpack.c.l.b16 %v20
  %v31 = vpack.c.b16 %v28, %v27
  %v32 = vpack.c.b16 %v30, %v29
  %v35 = vunpack.c.l.b16 %v21
  %v36 = vunpack.c.l.b16 %v22
  %v37 = vpack.c.b16 %v36, %v35
  %vm39 = vcmask 130048
  %v41 = vsel %vm39, %v31, 0
  %v44 = vsel %vm39, %v32, 0
  %46 = vmatprep.subr.bf16.mxu0 0
  %47 = vmatpush1.bf16.msra.mxu0 %v37
  %48 = vmatprep.subr.bf16.mxu0 0
  %49 = vmatpush1.bf16.msra.mxu0 0
  %50 = vmatprep.subr.bf16.mxu0 0
  %51 = vmatpush1.bf16.msra.mxu0 0
  %52 = vmatprep.subr.bf16.mxu0 0
  %53 = vmatpush1.bf16.msra.mxu0 0
  %54 = vmatprep.subr.bf16.mxu0 0
  %55 = vmatpush1.bf16.msra.mxu0 0
  %56 = vmatprep.subr.bf16.mxu0 0
  %57 = vmatpush1.bf16.msra.mxu0 0
  %58 = vmatprep.subr.bf16.mxu0 0
  %59 = vmatpush1.bf16.msra.mxu0 0
  %60 = vmatprep.subr.bf16.mxu0 0
  %61 = vmatpush1.bf16.msra.mxu0 0
  %62 = vmatprep.subr.bf16.mxu0 0
  %63 = vmatpush1.bf16.msra.mxu0 0
  %64 = vmatprep.subr.bf16.mxu0 0
  %65 = vmatpush1.bf16.msra.mxu0 0
  %66 = vmatprep.subr.bf16.mxu0 0
  %67 = vmatpush1.bf16.msra.mxu0 0
  %68 = vmatprep.subr.bf16.mxu0 0
  %69 = vmatpush1.bf16.msra.mxu0 0
  %70 = vmatprep.subr.bf16.mxu0 0
  %71 = vmatpush1.bf16.msra.mxu0 0
  %72 = vmatprep.subr.bf16.mxu0 0
  %73 = vmatpush1.bf16.msra.mxu0 0
  %74 = vmatprep.subr.bf16.mxu0 0
  %75 = vmatpush1.bf16.msra.mxu0 0
  %76 = vmatprep.subr.bf16.mxu0 0
  %77 = vmatpush1.bf16.msra.mxu0 0
  %78 = vmatprep.mubr.bf16.mxu0 0
  %79 = vmatmul.mubr.bf16.gmra.mrb[0].mxu0 %v41
  %v80 = vpop.f32.mrb[0].mxu0
  %v81 = vadd.f32 0.0, %v80
  %v82 = vpop.f32.mrb[0].mxu0
  %v83 = vpop.f32.mrb[0].mxu0
  %v84 = vadd.f32 0.0, %v83
  %v85 = vpop.f32.mrb[0].mxu0
  %86 = vmatprep.mubr.bf16.mxu0 0
  %87 = vmatmul.mubr.bf16.gmra.mrb[0].mxu0 %v44
  %v88 = vpop.f32.mrb[0].mxu0
  %v89 = vadd.f32 0.0, %v88
  %v90 = vpop.f32.mrb[0].mxu0
  %v91 = vpop.f32.mrb[0].mxu0
  %v92 = vadd.f32 0.0, %v91
  %v93 = vpop.f32.mrb[0].mxu0
  %94 = vdwg.mxu0
  %v95 = vunpack.c.l.bf16 %v17
  %v96 = vunpack.c.l.bf16 %v18
  %v97 = vunpack.c.l.bf16 %v19
  %v98 = vunpack.c.l.bf16 %v20
  %v99 = vsel %vm39, %v95, 0.0
  %100 = vadd.xlane.f32.xlu0 %v99
  %v101 = vpop.xlane.xlu0 %100
  %v102 = vsel %vm39, %v96, 0.0
  %103 = vadd.xlane.f32.xlu0 %v102
  %v104 = vpop.xlane.xlu0 %103
  %v105 = vsel %vm39, %v97, 0.0
  %106 = vadd.xlane.f32.xlu0 %v105
  %v107 = vpop.xlane.xlu0 %106
  %v108 = vsel %vm39, %v98, 0.0
  %109 = vadd.xlane.f32.xlu0 %v108
  %v110 = vpop.xlane.xlu0 %109
  %v111 = vunpack.c.l.bf16 %v21
  %v112 = vunpack.c.l.bf16 %v22
  %v113 = vadd.f32 %v111, %v112
  %v114 = vrot.slane %v113, 4
  %v115 = vadd.f32 %v113, %v114
  %v116 = vrot.slane %v115, 2
  %v117 = vadd.f32 %v115, %v116
  %v118 = vrot.slane %v117, 1
  %v119 = vadd.f32 %v117, %v118
  %v120 = vadd.f32 %v101, %v119
  %v121 = vadd.f32 %v104, %v119
  %v122 = vadd.f32 %v107, %v119
  %v123 = vadd.f32 %v110, %v119
  %v124 = vmul.f32 %v81, 2.0
  %v125 = vmul.f32 %v84, 2.0
  %v126 = vmul.f32 %v89, 2.0
  %v127 = vmul.f32 %v92, 2.0
  %v128 = vsub.f32 %v120, %v124
  %v129 = vsub.f32 %v121, %v125
  %v130 = vsub.f32 %v122, %v126
  %v131 = vsub.f32 %v123, %v127
  %v132 = vlaneseq
  %v133 = vand.u32 %v132, 127
  %s134 = smul.u32 0, 128
  %v135 = vstv %s134
  %v136 = vadd.s32 %v133, %v135
  %vm137 = vcmp.ge.s32.totalorder %v136, 32
  %v138 = vsel %vm137, -inf, %v128
  %v139 = vsel %vm137, -inf, %v129
  %v140 = vsel %vm137, -inf, %v130
  %v141 = vsel %vm137, -inf, %v131
  %v142 = vpack.c.bf16 %v139, %v138
  %v143 = vpack.c.bf16 %v141, %v140
  %144 = vst [vmem:[%s3] sm:$0xff] %v142
  %145 = vst [vmem:[%s3 + $0x8] sm:$0xff] %v143
  %v146 = vld [vmem:[%s0] sm:$0xff]
  %v147 = vld [vmem:[%s0 + $0x8] sm:$0xff]
  %v148 = vld [vmem:[%s0 + $0x10] sm:$0xff]
  %v149 = vld [vmem:[%s0 + $0x18] sm:$0xff]
  %150 = vset.pattern.permute.xlu0 0
  %151 = vperm.xlu0 %150, %v146
  %v152 = vpop.permute.xlu0 %151
  %153 = vset.pattern.permute.xlu0 0
  %154 = vperm.xlu0 %153, %v147
  %v155 = vpop.permute.xlu0 %154
  %156 = vset.pattern.permute.xlu0 0
  %157 = vperm.xlu0 %156, %v148
  %v158 = vpop.permute.xlu0 %157
  %159 = vset.pattern.permute.xlu0 0
  %160 = vperm.xlu0 %159, %v149
  %v161 = vpop.permute.xlu0 %160
  %vm162 = vcmp.eq.s32.totalorder %v136, %v152
  %vm163 = vcmp.eq.s32.totalorder %v136, %v155
  %vm164 = vcmp.eq.s32.totalorder %v136, %v158
  %vm165 = vcmp.eq.s32.totalorder %v136, %v161
  %vm166 = vmor %vm162, %vm137
  %vm167 = vmor %vm163, %vm137
  %vm168 = vmor %vm164, %vm137
  %vm169 = vmor %vm165, %vm137
  %v170 = vsel %vm166, inf, %v128
  %v171 = vsel %vm167, inf, %v129
  %v172 = vsel %vm168, inf, %v130
  %v173 = vsel %vm169, inf, %v131
  %174 = vmin.xlane.f32.xlu0 %v170
  %v175 = vpop.xlane.xlu0 %174
  %176 = vmin.xlane.f32.xlu0 %v171
  %v177 = vpop.xlane.xlu0 %176
  %178 = vmin.xlane.f32.xlu0 %v172
  %v179 = vpop.xlane.xlu0 %178
  %180 = vmin.xlane.f32.xlu0 %v173
  %v181 = vpop.xlane.xlu0 %180
  %p182 = scmp.eq.s32.totalorder 0, 0
  // Predicated region
  $region14: #{_device_forward.5} parent=0 // pred_check
    %p183 = pneg %p182
  $region15: #{_device_forward.5} parent=0 // pred_check_branch
    %185 = sbr.rel (%p183) target = $region17
  $region16: #{_device_forward.5} parent=0 // pred_region
    %vm186 = vcmask 7168
    %187 = vst.msk [vmem:[%s4] sm:$0xff] %vm186, inf
    %188 = vst.msk [vmem:[%s4 + $0x8] sm:$0xff] %vm186, inf
    %189 = vst.msk [vmem:[%s4 + $0x10] sm:$0xff] %vm186, inf
    %190 = vst.msk [vmem:[%s4 + $0x18] sm:$0xff] %vm186, inf
  $region17: #{_device_forward.5} parent=0 // pred_fallthru
    _
  %v191 = vld [vmem:[%s4] sm:$0xff]
  %v192 = vld [vmem:[%s4 + $0x8] sm:$0xff]
  %v193 = vld [vmem:[%s4 + $0x10] sm:$0xff]
  %v194 = vld [vmem:[%s4 + $0x18] sm:$0xff]
  %v195 = vmin.f32 %v191, %v175
  %v196 = vmin.f32 %v192, %v177
  %v197 = vmin.f32 %v193, %v179
  %v198 = vmin.f32 %v194, %v181
  %vm199 = vcmask 7168
  %200 = vst.msk [vmem:[%s4] sm:$0xff] %vm199, %v195
  %201 = vst.msk [vmem:[%s4 + $0x8] sm:$0xff] %vm199, %v196
  %202 = vst.msk [vmem:[%s4 + $0x10] sm:$0xff] %vm199, %v197
  %203 = vst.msk [vmem:[%s4 + $0x18] sm:$0xff] %vm199, %v198
  // Predicated region
  $region18: #{_device_forward.5} parent=0 // pred_check
    _
  $region19: #{_device_forward.5} parent=0 // pred_check_branch
    %205 = sbr.rel (0) target = $region21
  $region20: #{_device_forward.5} parent=0 // pred_region
    _
  $region21: #{_device_forward.5} parent=0 // pred_fallthru
    _
  // Predicated region
  $region22: #{_device_forward.5} parent=0 // pred_check
    _
  $region23: #{_device_forward.5} parent=0 // pred_check_branch
    %207 = sbr.rel (0) target = $region25
  $region24: #{_device_forward.5} parent=0 // pred_region
    _
  $region25: #{_device_forward.5} parent=0 // pred_fallthru
    _
  // Predicated region
  $region26: #{_device_forward.5} parent=0 // pred_check
    _
  $region27: #{_device_forward.5} parent=0 // pred_check_branch
    %209 = sbr.rel (0) target = $region29
  $region28: #{_device_forward.5} parent=0 // pred_region
    _
  $region29: #{_device_forward.5} parent=0 // pred_fallthru
    _
  // Predicated region
  $region30: #{_device_forward.5} parent=0 // pred_check
    _
  $region31: #{_device_forward.5} parent=0 // pred_check_branch
    %211 = sbr.rel (0) target = $region33
  $region32: #{_device_forward.5} parent=0 // pred_region
    _
  $region33: #{_device_forward.5} parent=0 // pred_fallthru
    _

// kernel: _device_forward.6
$region0: #{_device_forward.6}
  #allocation0 [shape = 'u32[]', space=smem, size = 0x4, offset = 0x4, fixed_abs, tag = 'smem constant byte address 0x4 - core index']
  #allocation1 [shape = 'u32[144,128]{1,0:T(1,128)}', space=vmem, size = 0x12000, scoped, tag = 'internal scratch']
  #allocation2 [shape = 'f32[32,32]{1,0:T(8,128)}', space=vmem, size = 0x4000, scoped, tag = 'scratch operand']
  %s0 = inlined_call_operand.vmem [shape: bf16[32,128], index: 0, kind: input, shape index: {}]
  %s1 = inlined_call_operand.vmem [shape: f32[32,1], index: 1, kind: input, shape index: {}]
  %s2 = inlined_call_operand.vmem [shape: f32[32,1], index: 2, kind: input, shape index: {}]
  %s3 = inlined_call_operand.vmem [shape: f32[128,32], index: 3, kind: input, shape index: {}]
  %s4 = inlined_call_operand.vmem [shape: f32[32,32], index: 4, kind: output, shape index: {}]
  %s5 = sld [smem:[#allocation0]]
  $region34: #{_device_forward.6} parent=0
    _
  %s7 = ssub.s32 1, %s5
  %s8 = scalar_select 0, %s7, %s5
  // Predicated region
  $region2: #{_device_forward.6} parent=0 // pred_check
    _
  $region3: #{_device_forward.6} parent=0 // pred_check_branch
    %10 = sbr.rel (0) target = $region5
  $region4: #{_device_forward.6} parent=0 // pred_region
    _
  $region5: #{_device_forward.6} parent=0 // pred_fallthru
    _
  // Predicated region
  $region6: #{_device_forward.6} parent=0 // pred_check
    _
  $region7: #{_device_forward.6} parent=0 // pred_check_branch
    %12 = sbr.rel (0) target = $region9
  $region8: #{_device_forward.6} parent=0 // pred_region
    _
  $region9: #{_device_forward.6} parent=0 // pred_fallthru
    _
  // Predicated region
  $region10: #{_device_forward.6} parent=0 // pred_check
    _
  $region11: #{_device_forward.6} parent=0 // pred_check_branch
    %14 = sbr.rel (0) target = $region13
  $region12: #{_device_forward.6} parent=0 // pred_region
    _
  $region13: #{_device_forward.6} parent=0 // pred_fallthru
    _
  // Predicated region
  $region14: #{_device_forward.6} parent=0 // pred_check
    _
  $region15: #{_device_forward.6} parent=0 // pred_check_branch
    %16 = sbr.rel (0) target = $region17
  $region16: #{_device_forward.6} parent=0 // pred_region
    _
  $region17: #{_device_forward.6} parent=0 // pred_fallthru
    _
  %p17 = scmp.eq.s32.totalorder 0, 0
  // Predicated region
  $region18: #{_device_forward.6} parent=0 // pred_check
    %p18 = pneg %p17
  $region19: #{_device_forward.6} parent=0 // pred_check_branch
    %20 = sbr.rel (%p18) target = $region21
  $region20: #{_device_forward.6} parent=0 // pred_region
    %vm21 = vcmask 261120
    %22 = vst.msk [vmem:[#allocation2] sm:$0xff] %vm21, 0.0
    %23 = vst.msk [vmem:[#allocation2 + $0x8] sm:$0xff] %vm21, 0.0
    %24 = vst.msk [vmem:[#allocation2 + $0x10] sm:$0xff] %vm21, 0.0
    %25 = vst.msk [vmem:[#allocation2 + $0x18] sm:$0xff] %vm21, 0.0
  $region21: #{_device_forward.6} parent=0 // pred_fallthru
    _
  %v26 = vld [vmem:[%s0] sm:$0xf]
  %v27 = vld [vmem:[%s0 + $0x4] sm:$0xf]
  %v28 = vld [vmem:[%s0 + $0x8] sm:$0xf]
  %v29 = vld [vmem:[%s0 + $0xc] sm:$0xf]
  %v30 = vunpack.c.l.bf16 %v26
  %v31 = vunpack.c.l.bf16 %v27
  %v32 = vunpack.c.l.bf16 %v28
  %v33 = vunpack.c.l.bf16 %v29
  %v34 = vld [vmem:[%s1] sm:$0xff]
  %v35 = vld [vmem:[%s1 + $0x8] sm:$0xff]
  %v36 = vld [vmem:[%s1 + $0x10] sm:$0xff]
  %v37 = vld [vmem:[%s1 + $0x18] sm:$0xff]
  %39 = vset.pattern.permute.xlu0 0
  %40 = vperm.xlu0 %39, %v34
  %v41 = vpop.permute.xlu0 %40
  %44 = vset.pattern.permute.xlu0 0
  %45 = vperm.xlu0 %44, %v35
  %v46 = vpop.permute.xlu0 %45
  %49 = vset.pattern.permute.xlu0 0
  %50 = vperm.xlu0 %49, %v36
  %v51 = vpop.permute.xlu0 %50
  %54 = vset.pattern.permute.xlu0 0
  %55 = vperm.xlu0 %54, %v37
  %v56 = vpop.permute.xlu0 %55
  %vm58 = vcmp.eq.f32.partialorder %v30, %v41
  %vm59 = vcmp.eq.f32.partialorder %v31, %v46
  %vm60 = vcmp.eq.f32.partialorder %v32, %v51
  %vm61 = vcmp.eq.f32.partialorder %v33, %v56
  %v62 = vsel %vm58, 1, 0
  %v63 = vsel %vm59, 1, 0
  %v64 = vsel %vm60, 1, 0
  %v65 = vsel %vm61, 1, 0
  %v66 = vcvt.s32.f32 %v62
  %v67 = vcvt.s32.f32 %v63
  %v68 = vcvt.s32.f32 %v64
  %v69 = vcvt.s32.f32 %v65
  %v70 = vld [vmem:[#allocation2] sm:$0xff]
  %v71 = vld [vmem:[#allocation2 + $0x8] sm:$0xff]
  %v72 = vld [vmem:[#allocation2 + $0x10] sm:$0xff]
  %v73 = vld [vmem:[#allocation2 + $0x18] sm:$0xff]
  %v74 = vld [vmem:[%s3] sm:$0xff]
  %v75 = vld [vmem:[%s3 + $0x8] sm:$0xff]
  %v76 = vld [vmem:[%s3 + $0x10] sm:$0xff]
  %v77 = vld [vmem:[%s3 + $0x18] sm:$0xff]
  %v78 = vld [vmem:[%s3 + $0x20] sm:$0xff]
  %v79 = vld [vmem:[%s3 + $0x28] sm:$0xff]
  %v80 = vld [vmem:[%s3 + $0x30] sm:$0xff]
  %v81 = vld [vmem:[%s3 + $0x38] sm:$0xff]
  %v82 = vld [vmem:[%s3 + $0x40] sm:$0xff]
  %v83 = vld [vmem:[%s3 + $0x48] sm:$0xff]
  %v84 = vld [vmem:[%s3 + $0x50] sm:$0xff]
  %v85 = vld [vmem:[%s3 + $0x58] sm:$0xff]
  %v86 = vld [vmem:[%s3 + $0x60] sm:$0xff]
  %v87 = vld [vmem:[%s3 + $0x68] sm:$0xff]
  %v88 = vld [vmem:[%s3 + $0x70] sm:$0xff]
  %v89 = vld [vmem:[%s3 + $0x78] sm:$0xff]
  %90 = vmatprep.subr.mxu0 0.0
  %91 = vmatpush1.msra.mxu0 %v74
  %92 = vmatprep.subr.mxu0 0.0
  %93 = vmatpush1.msra.mxu0 %v75
  %94 = vmatprep.subr.mxu0 0.0
  %95 = vmatpush1.msra.mxu0 %v76
  %96 = vmatprep.subr.mxu0 0.0
  %97 = vmatpush1.msra.mxu0 %v77
  %98 = vmatprep.subr.mxu0 0.0
  %99 = vmatpush1.msra.mxu0 %v78
  %100 = vmatprep.subr.mxu0 0.0
  %101 = vmatpush1.msra.mxu0 %v79
  %102 = vmatprep.subr.mxu0 0.0
  %103 = vmatpush1.msra.mxu0 %v80
  %104 = vmatprep.subr.mxu0 0.0
  %105 = vmatpush1.msra.mxu0 %v81
  %106 = vmatprep.subr.mxu0 0.0
  %107 = vmatpush1.msra.mxu0 %v82
  %108 = vmatprep.subr.mxu0 0.0
  %109 = vmatpush1.msra.mxu0 %v83
  %110 = vmatprep.subr.mxu0 0.0
  %111 = vmatpush1.msra.mxu0 %v84
  %112 = vmatprep.subr.mxu0 0.0
  %113 = vmatpush1.msra.mxu0 %v85
  %114 = vmatprep.subr.mxu0 0.0
  %115 = vmatpush1.msra.mxu0 %v86
  %116 = vmatprep.subr.mxu0 0.0
  %117 = vmatpush1.msra.mxu0 %v87
  %118 = vmatprep.subr.mxu0 0.0
  %119 = vmatpush1.msra.mxu0 %v88
  %120 = vmatprep.subr.mxu0 0.0
  %121 = vmatpush1.msra.mxu0 %v89
  %122 = vmatprep.subr.mxu0 0.0
  %123 = vmatpush1.msra.mxu0 0.0
  %124 = vmatprep.subr.mxu0 0.0
  %125 = vmatpush1.msra.mxu0 0.0
  %126 = vmatprep.subr.mxu0 0.0
  %127 = vmatpush1.msra.mxu0 0.0
  %128 = vmatprep.subr.mxu0 0.0
  %129 = vmatpush1.msra.mxu0 0.0
  %130 = vmatprep.subr.mxu0 0.0
  %131 = vmatpush1.msra.mxu0 0.0
  %132 = vmatprep.subr.mxu0 0.0
  %133 = vmatpush1.msra.mxu0 0.0
  %134 = vmatprep.subr.mxu0 0.0
  %135 = vmatpush1.msra.mxu0 0.0
  %136 = vmatprep.subr.mxu0 0.0
  %137 = vmatpush1.msra.mxu0 0.0
  %138 = vmatprep.subr.mxu0 0.0
  %139 = vmatpush1.msra.mxu0 0.0
  %140 = vmatprep.subr.mxu0 0.0
  %141 = vmatpush1.msra.mxu0 0.0
  %142 = vmatprep.subr.mxu0 0.0
  %143 = vmatpush1.msra.mxu0 0.0
  %144 = vmatprep.subr.mxu0 0.0
  %145 = vmatpush1.msra.mxu0 0.0
  %146 = vmatprep.subr.mxu0 0.0
  %147 = vmatpush1.msra.mxu0 0.0
  %148 = vmatprep.subr.mxu0 0.0
  %149 = vmatpush1.msra.mxu0 0.0
  %150 = vmatprep.subr.mxu0 0.0
  %151 = vmatpush1.msra.mxu0 0.0
  %152 = vmatprep.subr.mxu0 0.0
  %153 = vmatpush1.msra.mxu0 0.0
  %154 = vmatprep.mubr.f32.mxu0 0.0
  %155 = vmatmul.mubr.f32.gmra.mrb[0].mxu0 %v66
  %v156 = vpop.f32.mrb[0].mxu0
  %v157 = vadd.f32 0.0, %v156
  %v158 = vpop.f32.mrb[0].mxu0
  %159 = vmatprep.mubr.f32.mxu0 0.0
  %160 = vmatmul.mubr.f32.gmra.mrb[0].mxu0 %v67
  %v161 = vpop.f32.mrb[0].mxu0
  %v162 = vadd.f32 0.0, %v161
  %v163 = vpop.f32.mrb[0].mxu0
  %164 = vmatprep.mubr.f32.mxu0 0.0
  %165 = vmatmul.mubr.f32.gmra.mrb[0].mxu0 %v68
  %v166 = vpop.f32.mrb[0].mxu0
  %v167 = vadd.f32 0.0, %v166
  %v168 = vpop.f32.mrb[0].mxu0
  %169 = vmatprep.mubr.f32.mxu0 0.0
  %170 = vmatmul.mubr.f32.gmra.mrb[0].mxu0 %v69
  %v171 = vpop.f32.mrb[0].mxu0
  %v172 = vadd.f32 0.0, %v171
  %v173 = vpop.f32.mrb[0].mxu0
  %174 = vdwg.mxu0
  %v175 = vadd.f32 %v70, %v157
  %v176 = vadd.f32 %v71, %v162
  %v177 = vadd.f32 %v72, %v167
  %v178 = vadd.f32 %v73, %v172
  %vm179 = vcmask 261120
  %180 = vst.msk [vmem:[#allocation2] sm:$0xff] %vm179, %v175
  %181 = vst.msk [vmem:[#allocation2 + $0x8] sm:$0xff] %vm179, %v176
  %182 = vst.msk [vmem:[#allocation2 + $0x10] sm:$0xff] %vm179, %v177
  %183 = vst.msk [vmem:[#allocation2 + $0x18] sm:$0xff] %vm179, %v178
  // Predicated region
  $region22: #{_device_forward.6} parent=0 // pred_check
    %p184 = pneg %p17
  $region23: #{_device_forward.6} parent=0 // pred_check_branch
    %186 = sbr.rel (%p184) target = $region25
  $region24: #{_device_forward.6} parent=0 // pred_region
    %v187 = vld [vmem:[#allocation2] sm:$0xff]
    %v188 = vld [vmem:[#allocation2 + $0x8] sm:$0xff]
    %v189 = vld [vmem:[#allocation2 + $0x10] sm:$0xff]
    %v190 = vld [vmem:[#allocation2 + $0x18] sm:$0xff]
    %v191 = vld [vmem:[%s2] sm:$0xff]
    %v192 = vld [vmem:[%s2 + $0x8] sm:$0xff]
    %v193 = vld [vmem:[%s2 + $0x10] sm:$0xff]
    %v194 = vld [vmem:[%s2 + $0x18] sm:$0xff]
    %196 = vset.pattern.permute.xlu0 0
    %197 = vperm.xlu0 %196, %v191
    %v198 = vpop.permute.xlu0 %197
    %201 = vset.pattern.permute.xlu0 0
    %202 = vperm.xlu0 %201, %v192
    %v203 = vpop.permute.xlu0 %202
    %206 = vset.pattern.permute.xlu0 0
    %207 = vperm.xlu0 %206, %v193
    %v208 = vpop.permute.xlu0 %207
    %211 = vset.pattern.permute.xlu0 0
    %212 = vperm.xlu0 %211, %v194
    %v213 = vpop.permute.xlu0 %212
    %v215 = vmul.f32 %v187, %v198
    %v216 = vmul.f32 %v188, %v203
    %v217 = vmul.f32 %v189, %v208
    %v218 = vmul.f32 %v190, %v213
    %v219 = vmul.f32 %v215, %v215
    %v220 = vmul.f32 %v216, %v216
    %v221 = vmul.f32 %v217, %v217
    %v222 = vmul.f32 %v218, %v218
    %v223 = vsel %vm179, %v219, 0.0
    %224 = vadd.xlane.f32.xlu0 %v223
    %v225 = vpop.xlane.xlu0 %224
    %v226 = vsel %vm179, %v220, 0.0
    %227 = vadd.xlane.f32.xlu0 %v226
    %v228 = vpop.xlane.xlu0 %227
    %v229 = vsel %vm179, %v221, 0.0
    %230 = vadd.xlane.f32.xlu0 %v229
    %v231 = vpop.xlane.xlu0 %230
    %v232 = vsel %vm179, %v222, 0.0
    %233 = vadd.xlane.f32.xlu0 %v232
    %v234 = vpop.xlane.xlu0 %233
    %v235 = vmax.f32 %v225, 1e-24
    %v236 = vmax.f32 %v228, 1e-24
    %v237 = vmax.f32 %v231, 1e-24
    %v238 = vmax.f32 %v234, 1e-24
    %v239 = vrsqrt.pop %v235
    %v240 = vrsqrt.pop %v236
    %v241 = vrsqrt.pop %v237
    %v242 = vrsqrt.pop %v238
    %v243 = vmul.f32 %v215, %v239
    %v244 = vmul.f32 %v216, %v240
    %v245 = vmul.f32 %v217, %v241
    %v246 = vmul.f32 %v218, %v242
    %247 = vst.msk [vmem:[%s4] sm:$0xff] %vm179, %v243
    %248 = vst.msk [vmem:[%s4 + $0x8] sm:$0xff] %vm179, %v244
    %249 = vst.msk [vmem:[%s4 + $0x10] sm:$0xff] %vm179, %v245
    %250 = vst.msk [vmem:[%s4 + $0x18] sm:$0xff] %vm179, %v246
  $region25: #{_device_forward.6} parent=0 // pred_fallthru
    _
  // Predicated region
  $region26: #{_device_forward.6} parent=0 // pred_check
    _
  $region27: #{_device_forward.6} parent=0 // pred_check_branch
    %252 = sbr.rel (0) target = $region29
  $region28: #{_device_forward.6} parent=0 // pred_region
    _
  $region29: #{_device_forward.6} parent=0 // pred_fallthru
    _
  // Predicated region
  $region30: #{_device_forward.6} parent=0 // pred_check
    _
  $region31: #{_device_forward.6} parent=0 // pred_check_branch
    %254 = sbr.rel (0) target = $region33
  $region32: #{_device_forward.6} parent=0 // pred_region
    _
  $region33: #{_device_forward.6} parent=0 // pred_fallthru
    _

// kernel: _device_forward.7
$region0: #{_device_forward.7}
  #allocation0 [shape = 'u32[]', space=smem, size = 0x4, offset = 0x4, fixed_abs, tag = 'smem constant byte address 0x4 - core index']
  #allocation1 [shape = 'u32[144,128]{1,0:T(1,128)}', space=vmem, size = 0x12000, scoped, tag = 'internal scratch']
  %s0 = inlined_call_operand.vmem [shape: f32[32,32], index: 0, kind: input, shape index: {}]
  %s1 = inlined_call_operand.vmem [shape: f32[128,32], index: 1, kind: input, shape index: {}]
  %s2 = inlined_call_operand.vmem [shape: f32[32,128], index: 2, kind: output, shape index: {}]
  %s3 = sld [smem:[#allocation0]]
  $region18: #{_device_forward.7} parent=0
    _
  %s5 = ssub.s32 1, %s3
  %s6 = scalar_select 0, %s5, %s3
  // Predicated region
  $region2: #{_device_forward.7} parent=0 // pred_check
    _
  $region3: #{_device_forward.7} parent=0 // pred_check_branch
    %8 = sbr.rel (0) target = $region5
  $region4: #{_device_forward.7} parent=0 // pred_region
    _
  $region5: #{_device_forward.7} parent=0 // pred_fallthru
    _
  // Predicated region
  $region6: #{_device_forward.7} parent=0 // pred_check
    _
  $region7: #{_device_forward.7} parent=0 // pred_check_branch
    %10 = sbr.rel (0) target = $region9
  $region8: #{_device_forward.7} parent=0 // pred_region
    _
  $region9: #{_device_forward.7} parent=0 // pred_fallthru
    _
  %v11 = vld [vmem:[%s0] sm:$0xff]
  %v12 = vld [vmem:[%s0 + $0x8] sm:$0xff]
  %v13 = vld [vmem:[%s0 + $0x10] sm:$0xff]
  %v14 = vld [vmem:[%s0 + $0x18] sm:$0xff]
  %v15 = vld [vmem:[%s1] sm:$0xff]
  %v16 = vld [vmem:[%s1 + $0x8] sm:$0xff]
  %v17 = vld [vmem:[%s1 + $0x10] sm:$0xff]
  %v18 = vld [vmem:[%s1 + $0x18] sm:$0xff]
  %v19 = vld [vmem:[%s1 + $0x20] sm:$0xff]
  %v20 = vld [vmem:[%s1 + $0x28] sm:$0xff]
  %v21 = vld [vmem:[%s1 + $0x30] sm:$0xff]
  %v22 = vld [vmem:[%s1 + $0x38] sm:$0xff]
  %v23 = vld [vmem:[%s1 + $0x40] sm:$0xff]
  %v24 = vld [vmem:[%s1 + $0x48] sm:$0xff]
  %v25 = vld [vmem:[%s1 + $0x50] sm:$0xff]
  %v26 = vld [vmem:[%s1 + $0x58] sm:$0xff]
  %v27 = vld [vmem:[%s1 + $0x60] sm:$0xff]
  %v28 = vld [vmem:[%s1 + $0x68] sm:$0xff]
  %v29 = vld [vmem:[%s1 + $0x70] sm:$0xff]
  %v30 = vld [vmem:[%s1 + $0x78] sm:$0xff]
  %vm31 = vcmask 261120
  %v33 = vsel %vm31, %v11, 0
  %v36 = vsel %vm31, %v12, 0
  %v39 = vsel %vm31, %v13, 0
  %v42 = vsel %vm31, %v14, 0
  %v45 = vsel %vm31, %v15, 0
  %v48 = vsel %vm31, %v16, 0
  %v51 = vsel %vm31, %v17, 0
  %v54 = vsel %vm31, %v18, 0
  %v57 = vsel %vm31, %v19, 0
  %v60 = vsel %vm31, %v20, 0
  %v63 = vsel %vm31, %v21, 0
  %v66 = vsel %vm31, %v22, 0
  %v69 = vsel %vm31, %v23, 0
  %v72 = vsel %vm31, %v24, 0
  %v75 = vsel %vm31, %v25, 0
  %v78 = vsel %vm31, %v26, 0
  %v81 = vsel %vm31, %v27, 0
  %v84 = vsel %vm31, %v28, 0
  %v87 = vsel %vm31, %v29, 0
  %v90 = vsel %vm31, %v30, 0
  %92 = vmatprep.subr.mxu0 0.0
  %93 = vmatpush1.xpose.msra.mxu0 %v45
  %94 = vmatprep.subr.mxu0 0.0
  %95 = vmatpush1.xpose.msra.mxu0 %v48
  %96 = vmatprep.subr.mxu0 0.0
  %97 = vmatpush1.xpose.msra.mxu0 %v51
  %98 = vmatprep.subr.mxu0 0.0
  %99 = vmatpush1.xpose.msra.mxu0 %v54
  %100 = vmatprep.subr.mxu0 0.0
  %101 = vmatpush1.xpose.msra.mxu0 %v57
  %102 = vmatprep.subr.mxu0 0.0
  %103 = vmatpush1.xpose.msra.mxu0 %v60
  %104 = vmatprep.subr.mxu0 0.0
  %105 = vmatpush1.xpose.msra.mxu0 %v63
  %106 = vmatprep.subr.mxu0 0.0
  %107 = vmatpush1.xpose.msra.mxu0 %v66
  %108 = vmatprep.subr.mxu0 0.0
  %109 = vmatpush1.xpose.msra.mxu0 %v69
  %110 = vmatprep.subr.mxu0 0.0
  %111 = vmatpush1.xpose.msra.mxu0 %v72
  %112 = vmatprep.subr.mxu0 0.0
  %113 = vmatpush1.xpose.msra.mxu0 %v75
  %114 = vmatprep.subr.mxu0 0.0
  %115 = vmatpush1.xpose.msra.mxu0 %v78
  %116 = vmatprep.subr.mxu0 0.0
  %117 = vmatpush1.xpose.msra.mxu0 %v81
  %118 = vmatprep.subr.mxu0 0.0
  %119 = vmatpush1.xpose.msra.mxu0 %v84
  %120 = vmatprep.subr.mxu0 0.0
  %121 = vmatpush1.xpose.msra.mxu0 %v87
  %122 = vmatprep.subr.mxu0 0.0
  %123 = vmatpush1.xpose.msra.mxu0 %v90
  %124 = vmatprep.subr.mxu0 0.0
  %125 = vmatpush1.xpose.msra.mxu0 0.0
  %126 = vmatprep.subr.mxu0 0.0
  %127 = vmatpush1.xpose.msra.mxu0 0.0
  %128 = vmatprep.subr.mxu0 0.0
  %129 = vmatpush1.xpose.msra.mxu0 0.0
  %130 = vmatprep.subr.mxu0 0.0
  %131 = vmatpush1.xpose.msra.mxu0 0.0
  %132 = vmatprep.subr.mxu0 0.0
  %133 = vmatpush1.xpose.msra.mxu0 0.0
  %134 = vmatprep.subr.mxu0 0.0
  %135 = vmatpush1.xpose.msra.mxu0 0.0
  %136 = vmatprep.subr.mxu0 0.0
  %137 = vmatpush1.xpose.msra.mxu0 0.0
  %138 = vmatprep.subr.mxu0 0.0
  %139 = vmatpush1.xpose.msra.mxu0 0.0
  %140 = vmatprep.subr.mxu0 0.0
  %141 = vmatpush1.xpose.msra.mxu0 0.0
  %142 = vmatprep.subr.mxu0 0.0
  %143 = vmatpush1.xpose.msra.mxu0 0.0
  %144 = vmatprep.subr.mxu0 0.0
  %145 = vmatpush1.xpose.msra.mxu0 0.0
  %146 = vmatprep.subr.mxu0 0.0
  %147 = vmatpush1.xpose.msra.mxu0 0.0
  %148 = vmatprep.subr.mxu0 0.0
  %149 = vmatpush1.xpose.msra.mxu0 0.0
  %150 = vmatprep.subr.mxu0 0.0
  %151 = vmatpush1.xpose.msra.mxu0 0.0
  %152 = vmatprep.subr.mxu0 0.0
  %153 = vmatpush1.xpose.msra.mxu0 0.0
  %154 = vmatprep.subr.mxu0 0.0
  %155 = vmatpush1.xpose.msra.mxu0 0.0
  %156 = vmatprep.mubr.f32.mxu0 0.0
  %157 = vmatmul.mubr.f32.gmra.mrb[0].mxu0 %v33
  %v158 = vpop.f32.mrb[0].mxu0
  %v159 = vadd.f32 0.0, %v158
  %v160 = vpop.f32.mrb[0].mxu0
  %161 = vmatprep.mubr.f32.mxu0 0.0
  %162 = vmatmul.mubr.f32.gmra.mrb[0].mxu0 %v36
  %v163 = vpop.f32.mrb[0].mxu0
  %v164 = vadd.f32 0.0, %v163
  %v165 = vpop.f32.mrb[0].mxu0
  %166 = vmatprep.mubr.f32.mxu0 0.0
  %167 = vmatmul.mubr.f32.gmra.mrb[0].mxu0 %v39
  %v168 = vpop.f32.mrb[0].mxu0
  %v169 = vadd.f32 0.0, %v168
  %v170 = vpop.f32.mrb[0].mxu0
  %171 = vmatprep.mubr.f32.mxu0 0.0
  %172 = vmatmul.mubr.f32.gmra.mrb[0].mxu0 %v42
  %v173 = vpop.f32.mrb[0].mxu0
  %v174 = vadd.f32 0.0, %v173
  %v175 = vpop.f32.mrb[0].mxu0
  %176 = vdwg.mxu0
  %v177 = vmul.f32 %v159, 14.285714
  %v178 = vmul.f32 %v164, 14.285714
  %v179 = vmul.f32 %v169, 14.285714
  %v180 = vmul.f32 %v174, 14.285714
  %181 = vst [vmem:[%s2] sm:$0xff] %v177
  %182 = vst [vmem:[%s2 + $0x8] sm:$0xff] %v178
  %183 = vst [vmem:[%s2 + $0x10] sm:$0xff] %v179
  %184 = vst [vmem:[%s2 + $0x18] sm:$0xff] %v180
  // Predicated region
  $region10: #{_device_forward.7} parent=0 // pred_check
    _
  $region11: #{_device_forward.7} parent=0 // pred_check_branch
    %186 = sbr.rel (0) target = $region13
  $region12: #{_device_forward.7} parent=0 // pred_region
    _
  $region13: #{_device_forward.7} parent=0 // pred_fallthru
    _
  // Predicated region
  $region14: #{_device_forward.7} parent=0 // pred_check
    _
  $region15: #{_device_forward.7} parent=0 // pred_check_branch
    %188 = sbr.rel (0) target = $region17
  $region16: #{_device_forward.7} parent=0 // pred_region
    _
  $region17: #{_device_forward.7} parent=0 // pred_fallthru
    _

// kernel: custom-call.4
$region0: #{custom-call.4}
  %s0 = inlined_call_operand.vmem [shape: u32[32,4], index: 0, kind: output, shape index: {}]

// kernel: _device_forward.4
$region0: #{_device_forward.4}
  #allocation0 [shape = 'u32[]', space=smem, size = 0x4, offset = 0x4, fixed_abs, tag = 'smem constant byte address 0x4 - core index']
  #allocation1 [shape = 'u32[144,128]{1,0:T(1,128)}', space=vmem, size = 0x12000, scoped, tag = 'internal scratch']
  #allocation2 [shape = 'f32[32,64]{1,0:T(8,128)}', space=vmem, size = 0x4000, scoped, tag = 'scratch operand']
  %s0 = inlined_call_operand.vmem [shape: bf16[256,256], index: 0, kind: input, shape index: {}]
  %s1 = inlined_call_operand.vmem [shape: bf16[256,6], index: 1, kind: input, shape index: {}]
  %s2 = inlined_call_operand.vmem [shape: bf16[32,256], index: 2, kind: input, shape index: {}]
  %s3 = inlined_call_operand.vmem [shape: f32[6,64], index: 3, kind: input, shape index: {}]
  %s4 = inlined_call_operand.vmem [shape: f32[1,64], index: 4, kind: input, shape index: {}]
  %s5 = inlined_call_operand.vmem [shape: f32[64,32], index: 5, kind: input, shape index: {}]
  %s6 = inlined_call_operand.vmem [shape: f32[1,32], index: 6, kind: input, shape index: {}]
  %s7 = inlined_call_operand.vmem [shape: f32[32,32], index: 7, kind: output, shape index: {}]
  %s8 = sld [smem:[#allocation0]]
  $region110: #{_device_forward.4} parent=0
    _
  %s10 = ssub.s32 1, %s8
  %s11 = scalar_select 0, %s10, %s8
  $region1: #{_device_forward.4} parent=0
    #allocation3 [shape = 'u8[16384]{0}', space=vmem, size = 0x4000, scoped, tag = 'input window, operand 2']
    loop: start=0, step=1, limit=4
    $region2: #{_device_forward.4} parent=1 // loop_pre_header
      _
    $region3: #{_device_forward.4} parent=1 // loop_header
      %s13 = sphi 0, %s17
      %p14 = scmp.ge.s32.totalorder %s13, 4
      %s23 = sphi 0, %s25
      %s26 = sphi 0, %s23
      %s27 = sphi 0, %s26
      %s43 = sphi 0, %s27
      %s47 = sphi 0, %s47
      %s49 = sphi 0, %s47
      %s50 = sphi 0, %s49
      %s64 = sphi 0, %s50
      %s70 = sphi 0, %s72
      %s73 = sphi 0, %s70
      %s74 = sphi 0, %s73
      %s90 = sphi 0, %s74
      %s94 = sphi 0, %s94
      %s96 = sphi 0, %s94
      %s97 = sphi 0, %s96
      %s111 = sphi 0, %s97
      %s115 = sphi 0, %s115
      %s117 = sphi 0, %s115
      %s118 = sphi 0, %s117
      %s132 = sphi 0, %s118
      %s136 = sphi 0, %s136
      %s138 = sphi 0, %s136
      %s139 = sphi 0, %s138
      %s153 = sphi 0, %s139
      %s157 = sphi 0, %s157
      %s159 = sphi 0, %s157
      %s160 = sphi 0, %s159
      %s174 = sphi 0, %s160
      %s178 = sphi 0, %s178
      %s180 = sphi 0, %s178
      %s181 = sphi 0, %s180
      %s195 = sphi 0, %s181
    $region4: #{_device_forward.4} parent=1 // loop_header_branch
      %16 = sbr.rel (%p14) target = $region8
    $region5: #{_device_forward.4} parent=1 // loop_body
      %s18 = ssub.s32 %s13, 1
      %s19 = ssub.s32 %s13, 2
      %s20 = sadd.s32 %s13, 1
      %s21 = ssub.s32 %s13, %s20
      %p22 = scmp.eq.s32.totalorder %s21, 0
      %s24 = sadd.s32 %s23, 1
      %s25 = scalar_select %p22, %s23, %s24
      %p28 = pneg %p22
      %p29 = scmp.eq.s32.totalorder %s13, 1
      %p30 = por %p28, %p29
      %p31 = scmp.ne.s32.totalorder %s23, %s26
      %p32 = scmp.eq.s32.totalorder %s13, 0
      %p33 = por %p31, %p32
      %p34 = scmp.ne.s32.totalorder %s23, %s26
      %p35 = scmp.eq.s32.totalorder %s18, 1
      %p36 = por %p34, %p35
      %p37 = scmp.ne.s32.totalorder %s26, %s27
      %p38 = scmp.eq.s32.totalorder %s18, 0
      %p39 = por %p37, %p38
      %p40 = scmp.ne.s32.totalorder %s26, %s27
      %p41 = scmp.eq.s32.totalorder %s19, 1
      %p42 = por %p40, %p41
      %p44 = scmp.ne.s32.totalorder %s27, %s43
      %p45 = scmp.eq.s32.totalorder %s19, 0
      %p46 = por %p44, %p45
      %s48 = sadd.s32 %s47, 1
      %p51 = scmp.eq.s32.totalorder %s13, 1
      %p52 = scmp.ne.s32.totalorder %s47, %s49
      %p53 = scmp.eq.s32.totalorder %s13, 0
      %p54 = por %p52, %p53
      %p55 = scmp.ne.s32.totalorder %s47, %s49
      %p56 = scmp.eq.s32.totalorder %s18, 1
      %p57 = por %p55, %p56
      %p58 = scmp.ne.s32.totalorder %s49, %s50
      %p59 = scmp.eq.s32.totalorder %s18, 0
      %p60 = por %p58, %p59
      %p61 = scmp.ne.s32.totalorder %s49, %s50
      %p62 = scmp.eq.s32.totalorder %s19, 1
      %p63 = por %p61, %p62
      %p65 = scmp.ne.s32.totalorder %s50, %s64
      %p66 = scmp.eq.s32.totalorder %s19, 0
      %p67 = por %p65, %p66
      %s68 = ssub.s32 %s13, %s20
      %p69 = scmp.eq.s32.totalorder %s68, 0
      %s71 = sadd.s32 %s70, 1
      %s72 = scalar_select %p69, %s70, %s71
      %p75 = pneg %p69
      %p76 = scmp.eq.s32.totalorder %s13, 1
      %p77 = por %p75, %p76
      %p78 = scmp.ne.s32.totalorder %s70, %s73
      %p79 = scmp.eq.s32.totalorder %s13, 0
      %p80 = por %p78, %p79
      %p81 = scmp.ne.s32.totalorder %s70, %s73
      %p82 = scmp.eq.s32.totalorder %s18, 1
      %p83 = por %p81, %p82
      %p84 = scmp.ne.s32.totalorder %s73, %s74
      %p85 = scmp.eq.s32.totalorder %s18, 0
      %p86 = por %p84, %p85
      %p87 = scmp.ne.s32.totalorder %s73, %s74
      %p88 = scmp.eq.s32.totalorder %s19, 1
      %p89 = por %p87, %p88
      %p91 = scmp.ne.s32.totalorder %s74, %s90
      %p92 = scmp.eq.s32.totalorder %s19, 0
      %p93 = por %p91, %p92
      %s95 = sadd.s32 %s94, 1
      %p98 = scmp.eq.s32.totalorder %s13, 1
      %p99 = scmp.ne.s32.totalorder %s94, %s96
      %p100 = scmp.eq.s32.totalorder %s13, 0
      %p101 = por %p99, %p100
      %p102 = scmp.ne.s32.totalorder %s94, %s96
      %p103 = scmp.eq.s32.totalorder %s18, 1
      %p104 = por %p102, %p103
      %p105 = scmp.ne.s32.totalorder %s96, %s97
      %p106 = scmp.eq.s32.totalorder %s18, 0
      %p107 = por %p105, %p106
      %p108 = scmp.ne.s32.totalorder %s96, %s97
      %p109 = scmp.eq.s32.totalorder %s19, 1
      %p110 = por %p108, %p109
      %p112 = scmp.ne.s32.totalorder %s97, %s111
      %p113 = scmp.eq.s32.totalorder %s19, 0
      %p114 = por %p112, %p113
      %s116 = sadd.s32 %s115, 1
      %p119 = scmp.eq.s32.totalorder %s13, 1
      %p120 = scmp.ne.s32.totalorder %s115, %s117
      %p121 = scmp.eq.s32.totalorder %s13, 0
      %p122 = por %p120, %p121
      %p123 = scmp.ne.s32.totalorder %s115, %s117
      %p124 = scmp.eq.s32.totalorder %s18, 1
      %p125 = por %p123, %p124
      %p126 = scmp.ne.s32.totalorder %s117, %s118
      %p127 = scmp.eq.s32.totalorder %s18, 0
      %p128 = por %p126, %p127
      %p129 = scmp.ne.s32.totalorder %s117, %s118
      %p130 = scmp.eq.s32.totalorder %s19, 1
      %p131 = por %p129, %p130
      %p133 = scmp.ne.s32.totalorder %s118, %s132
      %p134 = scmp.eq.s32.totalorder %s19, 0
      %p135 = por %p133, %p134
      %s137 = sadd.s32 %s136, 1
      %p140 = scmp.eq.s32.totalorder %s13, 1
      %p141 = scmp.ne.s32.totalorder %s136, %s138
      %p142 = scmp.eq.s32.totalorder %s13, 0
      %p143 = por %p141, %p142
      %p144 = scmp.ne.s32.totalorder %s136, %s138
      %p145 = scmp.eq.s32.totalorder %s18, 1
      %p146 = por %p144, %p145
      %p147 = scmp.ne.s32.totalorder %s138, %s139
      %p148 = scmp.eq.s32.totalorder %s18, 0
      %p149 = por %p147, %p148
      %p150 = scmp.ne.s32.totalorder %s138, %s139
      %p151 = scmp.eq.s32.totalorder %s19, 1
      %p152 = por %p150, %p151
      %p154 = scmp.ne.s32.totalorder %s139, %s153
      %p155 = scmp.eq.s32.totalorder %s19, 0
      %p156 = por %p154, %p155
      %s158 = sadd.s32 %s157, 1
      %p161 = scmp.eq.s32.totalorder %s13, 1
      %p162 = scmp.ne.s32.totalorder %s157, %s159
      %p163 = scmp.eq.s32.totalorder %s13, 0
      %p164 = por %p162, %p163
      %p165 = scmp.ne.s32.totalorder %s157, %s159
      %p166 = scmp.eq.s32.totalorder %s18, 1
      %p167 = por %p165, %p166
      %p168 = scmp.ne.s32.totalorder %s159, %s160
      %p169 = scmp.eq.s32.totalorder %s18, 0
      %p170 = por %p168, %p169
      %p171 = scmp.ne.s32.totalorder %s159, %s160
      %p172 = scmp.eq.s32.totalorder %s19, 1
      %p173 = por %p171, %p172
      %p175 = scmp.ne.s32.totalorder %s160, %s174
      %p176 = scmp.eq.s32.totalorder %s19, 0
      %p177 = por %p175, %p176
      %s179 = sadd.s32 %s178, 1
      %p182 = scmp.eq.s32.totalorder %s13, 1
      %p183 = scmp.ne.s32.totalorder %s178, %s180
      %p184 = scmp.eq.s32.totalorder %s13, 0
      %p185 = por %p183, %p184
      %p186 = scmp.ne.s32.totalorder %s178, %s180
      %p187 = scmp.eq.s32.totalorder %s18, 1
      %p188 = por %p186, %p187
      %p189 = scmp.ne.s32.totalorder %s180, %s181
      %p190 = scmp.eq.s32.totalorder %s18, 0
      %p191 = por %p189, %p190
      %p192 = scmp.ne.s32.totalorder %s180, %s181
      %p193 = scmp.eq.s32.totalorder %s19, 1
      %p194 = por %p192, %p193
      %p196 = scmp.ne.s32.totalorder %s181, %s195
      %p197 = scmp.eq.s32.totalorder %s19, 0
      %p198 = por %p196, %p197
      %p199 = scmp.le.s32.totalorder 1, %s13
      %p200 = scmp.lt.s32.totalorder %s13, 3
      %p201 = pnand %p199, %p200
      %p202 = pneg %p201
      // Predicated region
      $region9: #{_device_forward.4} parent=5 // pred_check
        _
      $region10: #{_device_forward.4} parent=5 // pred_check_branch
        %204 = sbr.rel (%p201) target = $region12
      $region11: #{_device_forward.4} parent=5 // pred_region
        %s205 = ssub.s32 %s13, 1
        // Predicated region
        $region13: #{_device_forward.4} parent=11 // pred_check
          %p206 = pneg %p60
        $region14: #{_device_forward.4} parent=11 // pred_check_branch
          %208 = sbr.rel (%p206) target = $region16
        $region15: #{_device_forward.4} parent=11 // pred_region
          _
        $region16: #{_device_forward.4} parent=11 // pred_fallthru
          _
        // Predicated region
        $region17: #{_device_forward.4} parent=11 // pred_check
          %p209 = pneg %p107
        $region18: #{_device_forward.4} parent=11 // pred_check_branch
          %211 = sbr.rel (%p209) target = $region20
        $region19: #{_device_forward.4} parent=11 // pred_region
          _
        $region20: #{_device_forward.4} parent=11 // pred_fallthru
          _
        // Predicated region
        $region21: #{_device_forward.4} parent=11 // pred_check
          %p212 = pneg %p128
        $region22: #{_device_forward.4} parent=11 // pred_check_branch
          %214 = sbr.rel (%p212) target = $region24
        $region23: #{_device_forward.4} parent=11 // pred_region
          _
        $region24: #{_device_forward.4} parent=11 // pred_fallthru
          _
        // Predicated region
        $region25: #{_device_forward.4} parent=11 // pred_check
          %p215 = pneg %p149
        $region26: #{_device_forward.4} parent=11 // pred_check_branch
          %217 = sbr.rel (%p215) target = $region28
        $region27: #{_device_forward.4} parent=11 // pred_region
          _
        $region28: #{_device_forward.4} parent=11 // pred_fallthru
          _
        // Predicated region
        $region29: #{_device_forward.4} parent=11 // pred_check
          %p218 = pneg %p170
        $region30: #{_device_forward.4} parent=11 // pred_check_branch
          %220 = sbr.rel (%p218) target = $region32
        $region31: #{_device_forward.4} parent=11 // pred_region
          _
        $region32: #{_device_forward.4} parent=11 // pred_fallthru
          _
      $region12: #{_device_forward.4} parent=5 // pred_fallthru
        _
      %p221 = scmp.lt.s32.totalorder %s13, 2
      // Predicated region
      $region33: #{_device_forward.4} parent=5 // pred_check
        %p222 = pneg %p221
      $region34: #{_device_forward.4} parent=5 // pred_check_branch
        %224 = sbr.rel (%p222) target = $region36
      $region35: #{_device_forward.4} parent=5 // pred_region
        // Predicated region
        $region37: #{_device_forward.4} parent=35 // pred_check
          %p225 = pneg %p33
        $region38: #{_device_forward.4} parent=35 // pred_check_branch
          %227 = sbr.rel (%p225) target = $region40
        $region39: #{_device_forward.4} parent=35 // pred_region
          %s228 = smul.u32 16, %s13
          %p229 = scmp.lt.s32.totalorder %s228, 31
          %s230 = scalar_select %p229, %s228, 31
          %s231 = smul.addr %s230, 2
          %s232 = smul.addr %s231, 4
          %s233 = scalar_lea.vmem %s0, %s232
          %s234 = smul.u32 16, %s13
        $region40: #{_device_forward.4} parent=35 // pred_fallthru
          _
        // Predicated region
        $region41: #{_device_forward.4} parent=35 // pred_check
          %p235 = pneg %p80
        $region42: #{_device_forward.4} parent=35 // pred_check_branch
          %237 = sbr.rel (%p235) target = $region44
        $region43: #{_device_forward.4} parent=35 // pred_region
          %s238 = sand.u32 %s70, 1
          %s239 = sand.u32 %s70, 1
          %s240 = smul.addr %s239, 16
          %s241 = scalar_lea.vmem [#allocation3], %s240
          %s242 = smul.addr %s13, 4
          %s243 = scalar_lea.vmem %s2, %s242
          // Predicated region
          $region45: #{_device_forward.4} parent=43 // pred_check
            _
          $region46: #{_device_forward.4} parent=43 // pred_check_branch
            %245 = sbr.rel (0) target = $region48
          $region47: #{_device_forward.4} parent=43 // pred_region
            // Predicated region
            $region49: #{_device_forward.4} parent=47 // pred_check
              _
            $region50: #{_device_forward.4} parent=47 // pred_check_branch
              %247 = sbr.rel target = $region52
            $region51: #{_device_forward.4} parent=47 // pred_region
              // Predicated region
              $region64: #{_device_forward.4} parent=51 // pred_check
                _
              $region65: #{_device_forward.4} parent=51 // pred_check_branch
                %268 = sbr.rel (0) target = $region67
              $region66: #{_device_forward.4} parent=51 // pred_region
                loop: start=0, step=1, limit=1
                $region68: #{_device_forward.4} parent=66 // loop_pre_header
                  _
                $region69: #{_device_forward.4} parent=66 // loop_header
                  %s270 = sphi 0, %s274
                  %p271 = scmp.ge.s32.totalorder %s270, 1
                  %s275 = sphi %s243, %s243
                  %s276 = sphi %s241, %s241
                $region70: #{_device_forward.4} parent=66 // loop_header_branch
                  %273 = sbr.rel (%p271) target = $region74
                $region71: #{_device_forward.4} parent=66 // loop_body
                  _
                $region72: #{_device_forward.4} parent=66 // loop_footer
                  %s274 = sadd.s32 1, %s270
                $region73: #{_device_forward.4} parent=66 // loop_footer_branch
                  %269 = sbr.rel target = $region69
                $region74: #{_device_forward.4} parent=66 // loop_exit
                  _
                loop: start=0, step=1, limit=1
                $region75: #{_device_forward.4} parent=66 // loop_pre_header
                  _
                $region76: #{_device_forward.4} parent=66 // loop_header
                  %s279 = sphi 0, %s283
                  %p280 = scmp.ge.s32.totalorder %s279, 1
                  %s284 = sphi %s243, %s243
                  %s285 = sphi %s241, %s241
                $region77: #{_device_forward.4} parent=66 // loop_header_branch
                  %282 = sbr.rel (%p280) target = $region81
                $region78: #{_device_forward.4} parent=66 // loop_body
                  %v286 = vld [vmem:[%s284] sm:$0xf]
                  %287 = vst [vmem:[%s285] sm:$0xf] %v286
                  %v288 = vld [vmem:[%s284 + $0x8] sm:$0xf]
                  %289 = vst [vmem:[%s285 + $0x4] sm:$0xf] %v288
                  %v290 = vld [vmem:[%s284 + $0x10] sm:$0xf]
                  %291 = vst [vmem:[%s285 + $0x8] sm:$0xf] %v290
                  %v292 = vld [vmem:[%s284 + $0x18] sm:$0xf]
                  %293 = vst [vmem:[%s285 + $0xc] sm:$0xf] %v292
                $region79: #{_device_forward.4} parent=66 // loop_footer
                  %s283 = sadd.s32 1, %s279
                $region80: #{_device_forward.4} parent=66 // loop_footer_branch
                  %278 = sbr.rel target = $region76
                $region81: #{_device_forward.4} parent=66 // loop_exit
                  _
              $region67: #{_device_forward.4} parent=51 // pred_fallthru
                _
            $region52: #{_device_forward.4} parent=47 // pred_fallthru
              _
            // Predicated region
            $region53: #{_device_forward.4} parent=47 // pred_check
              _
            $region54: #{_device_forward.4} parent=47 // pred_check_branch
              %249 = sbr.rel (0) target = $region56
            $region55: #{_device_forward.4} parent=47 // pred_region
              loop: start=0, step=1, limit=1
              $region57: #{_device_forward.4} parent=55 // loop_pre_header
                _
              $region58: #{_device_forward.4} parent=55 // loop_header
                %s252 = sphi 0, %s256
                %p253 = scmp.ge.s32.totalorder %s252, 1
                %s257 = sphi %s243, %s243
                %s258 = sphi %s241, %s241
              $region59: #{_device_forward.4} parent=55 // loop_header_branch
                %255 = sbr.rel (%p253) target = $region63
              $region60: #{_device_forward.4} parent=55 // loop_body
                %v259 = vld [vmem:[%s257] sm:$0xf]
                %260 = vst [vmem:[%s258] sm:$0xf] %v259
                %v261 = vld [vmem:[%s257 + $0x8] sm:$0xf]
                %262 = vst [vmem:[%s258 + $0x4] sm:$0xf] %v261
                %v263 = vld [vmem:[%s257 + $0x10] sm:$0xf]
                %264 = vst [vmem:[%s258 + $0x8] sm:$0xf] %v263
                %v265 = vld [vmem:[%s257 + $0x18] sm:$0xf]
                %266 = vst [vmem:[%s258 + $0xc] sm:$0xf] %v265
              $region61: #{_device_forward.4} parent=55 // loop_footer
                %s256 = sadd.s32 1, %s252
              $region62: #{_device_forward.4} parent=55 // loop_footer_branch
                %251 = sbr.rel target = $region58
              $region63: #{_device_forward.4} parent=55 // loop_exit
                _
            $region56: #{_device_forward.4} parent=47 // pred_fallthru
              _
          $region48: #{_device_forward.4} parent=43 // pred_fallthru
            _
          %294 = vnop
        $region44: #{_device_forward.4} parent=35 // pred_fallthru
          _
      $region36: #{_device_forward.4} parent=5 // pred_fallthru
        _
      %p295 = scmp.le.s32.totalorder 1, %s13
      %p296 = scmp.lt.s32.totalorder %s13, 3
      %p297 = pnand %p295, %p296
      %p298 = pneg %p297
      // Predicated region
      $region82: #{_device_forward.4} parent=5 // pred_check
        _
      $region83: #{_device_forward.4} parent=5 // pred_check_branch
        %300 = sbr.rel (%p297) target = $region85
      $region84: #{_device_forward.4} parent=5 // pred_region
        %s301 = ssub.s32 %s13, 1
        %s302 = sand.u32 %s73, 1
        %s303 = sand.u32 %s73, 1
        %s304 = smul.addr %s303, 16
        %s305 = scalar_lea.vmem [#allocation3], %s304
        // Predicated region
        $region86: #{_device_forward.4} parent=84 // pred_check
          %p306 = pneg %p86
        $region87: #{_device_forward.4} parent=84 // pred_check_branch
          %308 = sbr.rel (%p306) target = $region89
        $region88: #{_device_forward.4} parent=84 // pred_region
          _
        $region89: #{_device_forward.4} parent=84 // pred_fallthru
          _
        %s309 = smul.u32 16, %s18
        %p310 = scmp.lt.s32.totalorder %s309, 31
        %s311 = scalar_select %p310, %s309, 31
        %s312 = smul.addr %s311, 2
        %s313 = smul.addr %s312, 4
        %s314 = scalar_lea.vmem %s0, %s313
        %p315 = pneg %p39
        %p316 = pneg %p36
        %p317 = pneg %p60
        %p318 = pneg %p57
        %s319 = sand.u32 %s73, 1
        %s320 = sand.u32 %s73, 1
        %s321 = smul.addr %s320, 16
        %s322 = scalar_lea.vmem [#allocation3], %s321
        %p323 = pneg %p86
        %p324 = pneg %p83
        %p325 = pneg %p107
        %p326 = pneg %p104
        %p327 = pneg %p128
        %p328 = pneg %p125
        %p329 = pneg %p149
        %p330 = pneg %p146
        %p331 = pneg %p170
        %p332 = pneg %p167
        %p333 = pneg %p191
        %p334 = pneg %p188
        %s335 = smul.u32 16, %s18
        %p336 = scmp.lt.s32.totalorder %s335, 31
        %s337 = scalar_select %p336, %s335, 31
        %s338 = smul.addr %s337, 2
        %s339 = smul.addr %s338, 4
        %s340 = scalar_lea.vmem %s0, %s339
        %s341 = smul.u32 16, %s18
        %p343 = scmp.eq.s32.totalorder %s18, 0
        // Predicated region
        $region90: #{_device_forward.4} parent=84 // pred_check
          %p344 = pneg %p343
        $region91: #{_device_forward.4} parent=84 // pred_check_branch
          %346 = sbr.rel (%p344) target = $region93
        $region92: #{_device_forward.4} parent=84 // pred_region
          %vm347 = vcmask 523264
          %348 = vst.msk [vmem:[#allocation2] sm:$0xff] %vm347, 0.0
          %349 = vst.msk [vmem:[#allocation2 + $0x8] sm:$0xff] %vm347, 0.0
          %350 = vst.msk [vmem:[#allocation2 + $0x10] sm:$0xff] %vm347, 0.0
          %351 = vst.msk [vmem:[#allocation2 + $0x18] sm:$0xff] %vm347, 0.0
        $region93: #{_device_forward.4} parent=84 // pred_fallthru
          _
        %v352 = vld [vmem:[%s340] sm:$0xff]
        %v353 = vld [vmem:[%s340 + $0x8] sm:$0xff]
        %v354 = vld [vmem:[%s340 + $0x10] sm:$0xff]
        %v355 = vld [vmem:[%s340 + $0x18] sm:$0xff]
        %v356 = vld [vmem:[%s340 + $0x20] sm:$0xff]
        %v357 = vld [vmem:[%s340 + $0x28] sm:$0xff]
        %v358 = vld [vmem:[%s340 + $0x30] sm:$0xff]
        %v359 = vld [vmem:[%s340 + $0x38] sm:$0xff]
        %v360 = vld [vmem:[%s340 + $0x40] sm:$0xff]
        %v361 = vld [vmem:[%s340 + $0x48] sm:$0xff]
        %v362 = vld [vmem:[%s340 + $0x50] sm:$0xff]
        %v363 = vld [vmem:[%s340 + $0x58] sm:$0xff]
        %v364 = vld [vmem:[%s340 + $0x60] sm:$0xff]
        %v365 = vld [vmem:[%s340 + $0x68] sm:$0xff]
        %v366 = vld [vmem:[%s340 + $0x70] sm:$0xff]
        %v367 = vld [vmem:[%s340 + $0x78] sm:$0xff]
        %v368 = vld [vmem:[%s1] sm:$0xf]
        %v369 = vld [vmem:[%s1 + $0x4] sm:$0xf]
        %v370 = vld [vmem:[%s1 + $0x8] sm:$0xf]
        %v371 = vld [vmem:[%s1 + $0xc] sm:$0xf]
        %v372 = vld [vmem:[%s1 + $0x10] sm:$0xf]
        %v373 = vld [vmem:[%s1 + $0x14] sm:$0xf]
        %v374 = vld [vmem:[%s1 + $0x18] sm:$0xf]
        %v375 = vld [vmem:[%s1 + $0x1c] sm:$0xf]
        %v376 = vld [vmem:[%s1 + $0x20] sm:$0xf]
        %v377 = vld [vmem:[%s1 + $0x24] sm:$0xf]
        %v378 = vld [vmem:[%s1 + $0x28] sm:$0xf]
        %v379 = vld [vmem:[%s1 + $0x2c] sm:$0xf]
        %v380 = vld [vmem:[%s1 + $0x30] sm:$0xf]
        %v381 = vld [vmem:[%s1 + $0x34] sm:$0xf]
        %v382 = vld [vmem:[%s1 + $0x38] sm:$0xf]
        %v383 = vld [vmem:[%s1 + $0x3c] sm:$0xf]
        %v384 = vld [vmem:[%s1 + $0x40] sm:$0xf]
        %v385 = vld [vmem:[%s1 + $0x44] sm:$0xf]
        %v386 = vld [vmem:[%s1 + $0x48] sm:$0xf]
        %v387 = vld [vmem:[%s1 + $0x4c] sm:$0xf]
        %v388 = vld [vmem:[%s1 + $0x50] sm:$0xf]
        %v389 = vld [vmem:[%s1 + $0x54] sm:$0xf]
        %v390 = vld [vmem:[%s1 + $0x58] sm:$0xf]
        %v391 = vld [vmem:[%s1 + $0x5c] sm:$0xf]
        %v392 = vld [vmem:[%s1 + $0x60] sm:$0xf]
        %v393 = vld [vmem:[%s1 + $0x64] sm:$0xf]
        %v394 = vld [vmem:[%s1 + $0x68] sm:$0xf]
        %v395 = vld [vmem:[%s1 + $0x6c] sm:$0xf]
        %v396 = vld [vmem:[%s1 + $0x70] sm:$0xf]
        %v397 = vld [vmem:[%s1 + $0x74] sm:$0xf]
        %v398 = vld [vmem:[%s1 + $0x78] sm:$0xf]
        %v399 = vld [vmem:[%s1 + $0x7c] sm:$0xf]
        %v416 = vunpack.c.l.b16 %v352
        %v417 = vunpack.c.h.b16 %v352
        %v418 = vunpack.c.l.b16 %v353
        %v419 = vunpack.c.h.b16 %v353
        %v420 = vunpack.c.l.b16 %v354
        %v421 = vunpack.c.h.b16 %v354
        %v422 = vunpack.c.l.b16 %v355
        %v423 = vunpack.c.h.b16 %v355
        %v424 = vunpack.c.l.b16 %v356
        %v425 = vunpack.c.h.b16 %v356
        %v426 = vunpack.c.l.b16 %v357
        %v427 = vunpack.c.h.b16 %v357
        %v428 = vunpack.c.l.b16 %v358
        %v429 = vunpack.c.h.b16 %v358
        %v430 = vunpack.c.l.b16 %v359
        %v431 = vunpack.c.h.b16 %v359
        %v432 = vunpack.c.l.b16 %v360
        %v433 = vunpack.c.h.b16 %v360
        %v434 = vunpack.c.l.b16 %v361
        %v435 = vunpack.c.h.b16 %v361
        %v436 = vunpack.c.l.b16 %v362
        %v437 = vunpack.c.h.b16 %v362
        %v438 = vunpack.c.l.b16 %v363
        %v439 = vunpack.c.h.b16 %v363
        %v440 = vunpack.c.l.b16 %v364
        %v441 = vunpack.c.h.b16 %v364
        %v442 = vunpack.c.l.b16 %v365
        %v443 = vunpack.c.h.b16 %v365
        %v444 = vunpack.c.l.b16 %v366
        %v445 = vunpack.c.h.b16 %v366
        %v446 = vunpack.c.l.b16 %v367
        %v447 = vunpack.c.h.b16 %v367
        %v448 = vpack.c.b16 %v418, %v416
        %v449 = vpack.c.b16 %v419, %v417
        %v450 = vpack.c.b16 %v422, %v420
        %v451 = vpack.c.b16 %v423, %v421
        %v452 = vpack.c.b16 %v426, %v424
        %v453 = vpack.c.b16 %v427, %v425
        %v454 = vpack.c.b16 %v430, %v428
        %v455 = vpack.c.b16 %v431, %v429
        %v456 = vpack.c.b16 %v434, %v432
        %v457 = vpack.c.b16 %v435, %v433
        %v458 = vpack.c.b16 %v438, %v436
        %v459 = vpack.c.b16 %v439, %v437
        %v460 = vpack.c.b16 %v442, %v440
        %v461 = vpack.c.b16 %v443, %v441
        %v462 = vpack.c.b16 %v446, %v444
        %v463 = vpack.c.b16 %v447, %v445
        %v512 = vunpack.c.l.b16 %v368
        %v513 = vunpack.c.l.b16 %v369
        %v514 = vunpack.c.l.b16 %v370
        %v515 = vunpack.c.l.b16 %v371
        %v516 = vunpack.c.l.b16 %v372
        %v517 = vunpack.c.l.b16 %v373
        %v518 = vunpack.c.l.b16 %v374
        %v519 = vunpack.c.l.b16 %v375
        %v520 = vunpack.c.l.b16 %v376
        %v521 = vunpack.c.l.b16 %v377
        %v522 = vunpack.c.l.b16 %v378
        %v523 = vunpack.c.l.b16 %v379
        %v524 = vunpack.c.l.b16 %v380
        %v525 = vunpack.c.l.b16 %v381
        %v526 = vunpack.c.l.b16 %v382
        %v527 = vunpack.c.l.b16 %v383
        %v528 = vunpack.c.l.b16 %v384
        %v529 = vunpack.c.l.b16 %v385
        %v530 = vunpack.c.l.b16 %v386
        %v531 = vunpack.c.l.b16 %v387
        %v532 = vunpack.c.l.b16 %v388
        %v533 = vunpack.c.l.b16 %v389
        %v534 = vunpack.c.l.b16 %v390
        %v535 = vunpack.c.l.b16 %v391
        %v536 = vunpack.c.l.b16 %v392
        %v537 = vunpack.c.l.b16 %v393
        %v538 = vunpack.c.l.b16 %v394
        %v539 = vunpack.c.l.b16 %v395
        %v540 = vunpack.c.l.b16 %v396
        %v541 = vunpack.c.l.b16 %v397
        %v542 = vunpack.c.l.b16 %v398
        %v543 = vunpack.c.l.b16 %v399
        %v544 = vpack.c.b16 %v513, %v512
        %v545 = vpack.c.b16 %v515, %v514
        %v546 = vpack.c.b16 %v517, %v516
        %v547 = vpack.c.b16 %v519, %v518
        %v548 = vpack.c.b16 %v521, %v520
        %v549 = vpack.c.b16 %v523, %v522
        %v550 = vpack.c.b16 %v525, %v524
        %v551 = vpack.c.b16 %v527, %v526
        %v552 = vpack.c.b16 %v529, %v528
        %v553 = vpack.c.b16 %v531, %v530
        %v554 = vpack.c.b16 %v533, %v532
        %v555 = vpack.c.b16 %v535, %v534
        %v556 = vpack.c.b16 %v537, %v536
        %v557 = vpack.c.b16 %v539, %v538
        %v558 = vpack.c.b16 %v541, %v540
        %v559 = vpack.c.b16 %v543, %v542
        %576 = vmatprep.subr.bf16.mxu0 0
        %577 = vmatpush1.bf16.msra.mxu0 %v544
        %578 = vmatprep.subr.bf16.mxu0 0
        %579 = vmatpush1.bf16.msra.mxu0 %v545
        %580 = vmatprep.subr.bf16.mxu0 0
        %581 = vmatpush1.bf16.msra.mxu0 %v546
        %582 = vmatprep.subr.bf16.mxu0 0
        %583 = vmatpush1.bf16.msra.mxu0 %v547
        %584 = vmatprep.subr.bf16.mxu0 0
        %585 = vmatpush1.bf16.msra.mxu0 %v548
        %586 = vmatprep.subr.bf16.mxu0 0
        %587 = vmatpush1.bf16.msra.mxu0 %v549
        %588 = vmatprep.subr.bf16.mxu0 0
        %589 = vmatpush1.bf16.msra.mxu0 %v550
        %590 = vmatprep.subr.bf16.mxu0 0
        %591 = vmatpush1.bf16.msra.mxu0 %v551
        %592 = vmatprep.subr.bf16.mxu0 0
        %593 = vmatpush1.bf16.msra.mxu0 %v552
        %594 = vmatprep.subr.bf16.mxu0 0
        %595 = vmatpush1.bf16.msra.mxu0 %v553
        %596 = vmatprep.subr.bf16.mxu0 0
        %597 = vmatpush1.bf16.msra.mxu0 %v554
        %598 = vmatprep.subr.bf16.mxu0 0
        %599 = vmatpush1.bf16.msra.mxu0 %v555
        %600 = vmatprep.subr.bf16.mxu0 0
        %601 = vmatpush1.bf16.msra.mxu0 %v556
        %602 = vmatprep.subr.bf16.mxu0 0
        %603 = vmatpush1.bf16.msra.mxu0 %v557
        %604 = vmatprep.subr.bf16.mxu0 0
        %605 = vmatpush1.bf16.msra.mxu0 %v558
        %606 = vmatprep.subr.bf16.mxu0 0
        %607 = vmatpush1.bf16.msra.mxu0 %v559
        %608 = vmatprep.mubr.bf16.mxu0 %v449
        %609 = vmatmul.mubr.bf16.gmra.mrb[0].mxu0 %v448
        %v610 = vpop.f32.mrb[0].mxu0
        %v611 = vadd.f32 0.0, %v610
        %v612 = vpop.f32.mrb[0].mxu0
        %v613 = vpop.f32.mrb[0].mxu0
        %v614 = vadd.f32 0.0, %v613
        %v615 = vpop.f32.mrb[0].mxu0
        %616 = vmatprep.mubr.bf16.mxu0 %v451
        %617 = vmatmul.mubr.bf16.gmra.mrb[0].mxu0 %v450
        %v618 = vpop.f32.mrb[0].mxu0
        %v619 = vadd.f32 0.0, %v618
        %v620 = vpop.f32.mrb[0].mxu0
        %v621 = vpop.f32.mrb[0].mxu0
        %v622 = vadd.f32 0.0, %v621
        %v623 = vpop.f32.mrb[0].mxu0
        %624 = vmatprep.mubr.bf16.mxu0 %v453
        %625 = vmatmul.mubr.bf16.gmra.mrb[0].mxu0 %v452
        %v626 = vpop.f32.mrb[0].mxu0
        %v627 = vadd.f32 0.0, %v626
        %v628 = vpop.f32.mrb[0].mxu0
        %v629 = vpop.f32.mrb[0].mxu0
        %v630 = vadd.f32 0.0, %v629
        %v631 = vpop.f32.mrb[0].mxu0
        %632 = vmatprep.mubr.bf16.mxu0 %v455
        %633 = vmatmul.mubr.bf16.gmra.mrb[0].mxu0 %v454
        %v634 = vpop.f32.mrb[0].mxu0
        %v635 = vadd.f32 0.0, %v634
        %v636 = vpop.f32.mrb[0].mxu0
        %v637 = vpop.f32.mrb[0].mxu0
        %v638 = vadd.f32 0.0, %v637
        %v639 = vpop.f32.mrb[0].mxu0
        %640 = vmatprep.mubr.bf16.mxu0 %v457
        %641 = vmatmul.mubr.bf16.gmra.mrb[0].mxu0 %v456
        %v642 = vpop.f32.mrb[0].mxu0
        %v643 = vadd.f32 0.0, %v642
        %v644 = vpop.f32.mrb[0].mxu0
        %v645 = vpop.f32.mrb[0].mxu0
        %v646 = vadd.f32 0.0, %v645
        %v647 = vpop.f32.mrb[0].mxu0
        %648 = vmatprep.mubr.bf16.mxu0 %v459
        %649 = vmatmul.mubr.bf16.gmra.mrb[0].mxu0 %v458
        %v650 = vpop.f32.mrb[0].mxu0
        %v651 = vadd.f32 0.0, %v650
        %v652 = vpop.f32.mrb[0].mxu0
        %v653 = vpop.f32.mrb[0].mxu0
        %v654 = vadd.f32 0.0, %v653
        %v655 = vpop.f32.mrb[0].mxu0
        %656 = vmatprep.mubr.bf16.mxu0 %v461
        %657 = vmatmul.mubr.bf16.gmra.mrb[0].mxu0 %v460
        %v658 = vpop.f32.mrb[0].mxu0
        %v659 = vadd.f32 0.0, %v658
        %v660 = vpop.f32.mrb[0].mxu0
        %v661 = vpop.f32.mrb[0].mxu0
        %v662 = vadd.f32 0.0, %v661
        %v663 = vpop.f32.mrb[0].mxu0
        %664 = vmatprep.mubr.bf16.mxu0 %v463
        %665 = vmatmul.mubr.bf16.gmra.mrb[0].mxu0 %v462
        %v666 = vpop.f32.mrb[0].mxu0
        %v667 = vadd.f32 0.0, %v666
        %v668 = vpop.f32.mrb[0].mxu0
        %v669 = vpop.f32.mrb[0].mxu0
        %v670 = vadd.f32 0.0, %v669
        %v671 = vpop.f32.mrb[0].mxu0
        %672 = vdwg.mxu0
        %v673 = vld [vmem:[%s3] sm:$0x3f]
        %v674 = vld [vmem:[%s4] sm:$0x1]
        %v676 = vlaneseq
        %v677 = vshrl.u32 %v676, 7
        %v678 = vsub.s32 0, %v677
        %v679 = vrot.slane %v674, %v678
        %vm681 = vcmask 48128
        %v683 = vsel %vm681, %v611, 0
        %v686 = vsel %vm681, %v614, 0
        %v689 = vsel %vm681, %v619, 0
        %v692 = vsel %vm681, %v622, 0
        %v695 = vsel %vm681, %v627, 0
        %v698 = vsel %vm681, %v630, 0
        %v701 = vsel %vm681, %v635, 0
        %v704 = vsel %vm681, %v638, 0
        %v707 = vsel %vm681, %v643, 0
        %v710 = vsel %vm681, %v646, 0
        %v713 = vsel %vm681, %v651, 0
        %v716 = vsel %vm681, %v654, 0
        %v719 = vsel %vm681, %v659, 0
        %v722 = vsel %vm681, %v662, 0
        %v725 = vsel %vm681, %v667, 0
        %v728 = vsel %vm681, %v670, 0
        %vm730 = vcmask 1045504
        %v732 = vsel %vm730, %v673, 0
        %734 = vmatprep.subr.mxu0 0.0
        %735 = vmatpush1.msra.mxu0 %v732
        %736 = vmatprep.subr.mxu0 0.0
        %737 = vmatpush1.msra.mxu0 0.0
        %738 = vmatprep.subr.mxu0 0.0
        %739 = vmatpush1.msra.mxu0 0.0
        %740 = vmatprep.subr.mxu0 0.0
        %741 = vmatpush1.msra.mxu0 0.0
        %742 = vmatprep.subr.mxu0 0.0
        %743 = vmatpush1.msra.mxu0 0.0
        %744 = vmatprep.subr.mxu0 0.0
        %745 = vmatpush1.msra.mxu0 0.0
        %746 = vmatprep.subr.mxu0 0.0
        %747 = vmatpush1.msra.mxu0 0.0
        %748 = vmatprep.subr.mxu0 0.0
        %749 = vmatpush1.msra.mxu0 0.0
        %750 = vmatprep.subr.mxu0 0.0
        %751 = vmatpush1.msra.mxu0 0.0
        %752 = vmatprep.subr.mxu0 0.0
        %753 = vmatpush1.msra.mxu0 0.0
        %754 = vmatprep.subr.mxu0 0.0
        %755 = vmatpush1.msra.mxu0 0.0
        %756 = vmatprep.subr.mxu0 0.0
        %757 = vmatpush1.msra.mxu0 0.0
        %758 = vmatprep.subr.mxu0 0.0
        %759 = vmatpush1.msra.mxu0 0.0
        %760 = vmatprep.subr.mxu0 0.0
        %761 = vmatpush1.msra.mxu0 0.0
        %762 = vmatprep.subr.mxu0 0.0
        %763 = vmatpush1.msra.mxu0 0.0
        %764 = vmatprep.subr.mxu0 0.0
        %765 = vmatpush1.msra.mxu0 0.0
        %766 = vmatprep.subr.mxu0 0.0
        %767 = vmatpush1.msra.mxu0 0.0
        %768 = vmatprep.subr.mxu0 0.0
        %769 = vmatpush1.msra.mxu0 0.0
        %770 = vmatprep.subr.mxu0 0.0
        %771 = vmatpush1.msra.mxu0 0.0
        %772 = vmatprep.subr.mxu0 0.0
        %773 = vmatpush1.msra.mxu0 0.0
        %774 = vmatprep.subr.mxu0 0.0
        %775 = vmatpush1.msra.mxu0 0.0
        %776 = vmatprep.subr.mxu0 0.0
        %777 = vmatpush1.msra.mxu0 0.0
        %778 = vmatprep.subr.mxu0 0.0
        %779 = vmatpush1.msra.mxu0 0.0
        %780 = vmatprep.subr.mxu0 0.0
        %781 = vmatpush1.msra.mxu0 0.0
        %782 = vmatprep.subr.mxu0 0.0
        %783 = vmatpush1.msra.mxu0 0.0
        %784 = vmatprep.subr.mxu0 0.0
        %785 = vmatpush1.msra.mxu0 0.0
        %786 = vmatprep.subr.mxu0 0.0
        %787 = vmatpush1.msra.mxu0 0.0
        %788 = vmatprep.subr.mxu0 0.0
        %789 = vmatpush1.msra.mxu0 0.0
        %790 = vmatprep.subr.mxu0 0.0
        %791 = vmatpush1.msra.mxu0 0.0
        %792 = vmatprep.subr.mxu0 0.0
        %793 = vmatpush1.msra.mxu0 0.0
        %794 = vmatprep.subr.mxu0 0.0
        %795 = vmatpush1.msra.mxu0 0.0
        %796 = vmatprep.subr.mxu0 0.0
        %797 = vmatpush1.msra.mxu0 0.0
        %798 = vmatprep.mubr.f32.mxu0 0.0
        %799 = vmatmul.mubr.f32.gmra.mrb[0].mxu0 %v683
        %v800 = vpop.f32.mrb[0].mxu0
        %v801 = vadd.f32 %v679, %v800
        %v802 = vpop.f32.mrb[0].mxu0
        %803 = vmatprep.mubr.f32.mxu0 0.0
        %804 = vmatmul.mubr.f32.gmra.mrb[0].mxu0 %v686
        %v805 = vpop.f32.mrb[0].mxu0
        %v806 = vadd.f32 %v679, %v805
        %v807 = vpop.f32.mrb[0].mxu0
        %808 = vmatprep.mubr.f32.mxu0 0.0
        %809 = vmatmul.mubr.f32.gmra.mrb[0].mxu0 %v689
        %v810 = vpop.f32.mrb[0].mxu0
        %v811 = vadd.f32 %v679, %v810
        %v812 = vpop.f32.mrb[0].mxu0
        %813 = vmatprep.mubr.f32.mxu0 0.0
        %814 = vmatmul.mubr.f32.gmra.mrb[0].mxu0 %v692
        %v815 = vpop.f32.mrb[0].mxu0
        %v816 = vadd.f32 %v679, %v815
        %v817 = vpop.f32.mrb[0].mxu0
        %818 = vmatprep.mubr.f32.mxu0 0.0
        %819 = vmatmul.mubr.f32.gmra.mrb[0].mxu0 %v695
        %v820 = vpop.f32.mrb[0].mxu0
        %v821 = vadd.f32 %v679, %v820
        %v822 = vpop.f32.mrb[0].mxu0
        %823 = vmatprep.mubr.f32.mxu0 0.0
        %824 = vmatmul.mubr.f32.gmra.mrb[0].mxu0 %v698
        %v825 = vpop.f32.mrb[0].mxu0
        %v826 = vadd.f32 %v679, %v825
        %v827 = vpop.f32.mrb[0].mxu0
        %828 = vmatprep.mubr.f32.mxu0 0.0
        %829 = vmatmul.mubr.f32.gmra.mrb[0].mxu0 %v701
        %v830 = vpop.f32.mrb[0].mxu0
        %v831 = vadd.f32 %v679, %v830
        %v832 = vpop.f32.mrb[0].mxu0
        %833 = vmatprep.mubr.f32.mxu0 0.0
        %834 = vmatmul.mubr.f32.gmra.mrb[0].mxu0 %v704
        %v835 = vpop.f32.mrb[0].mxu0
        %v836 = vadd.f32 %v679, %v835
        %v837 = vpop.f32.mrb[0].mxu0
        %838 = vmatprep.mubr.f32.mxu0 0.0
        %839 = vmatmul.mubr.f32.gmra.mrb[0].mxu0 %v707
        %v840 = vpop.f32.mrb[0].mxu0
        %v841 = vadd.f32 %v679, %v840
        %v842 = vpop.f32.mrb[0].mxu0
        %843 = vmatprep.mubr.f32.mxu0 0.0
        %844 = vmatmul.mubr.f32.gmra.mrb[0].mxu0 %v710
        %v845 = vpop.f32.mrb[0].mxu0
        %v846 = vadd.f32 %v679, %v845
        %v847 = vpop.f32.mrb[0].mxu0
        %848 = vmatprep.mubr.f32.mxu0 0.0
        %849 = vmatmul.mubr.f32.gmra.mrb[0].mxu0 %v713
        %v850 = vpop.f32.mrb[0].mxu0
        %v851 = vadd.f32 %v679, %v850
        %v852 = vpop.f32.mrb[0].mxu0
        %853 = vmatprep.mubr.f32.mxu0 0.0
        %854 = vmatmul.mubr.f32.gmra.mrb[0].mxu0 %v716
        %v855 = vpop.f32.mrb[0].mxu0
        %v856 = vadd.f32 %v679, %v855
        %v857 = vpop.f32.mrb[0].mxu0
        %858 = vmatprep.mubr.f32.mxu0 0.0
        %859 = vmatmul.mubr.f32.gmra.mrb[0].mxu0 %v719
        %v860 = vpop.f32.mrb[0].mxu0
        %v861 = vadd.f32 %v679, %v860
        %v862 = vpop.f32.mrb[0].mxu0
        %863 = vmatprep.mubr.f32.mxu0 0.0
        %864 = vmatmul.mubr.f32.gmra.mrb[0].mxu0 %v722
        %v865 = vpop.f32.mrb[0].mxu0
        %v866 = vadd.f32 %v679, %v865
        %v867 = vpop.f32.mrb[0].mxu0
        %868 = vmatprep.mubr.f32.mxu0 0.0
        %869 = vmatmul.mubr.f32.gmra.mrb[0].mxu0 %v725
        %v870 = vpop.f32.mrb[0].mxu0
        %v871 = vadd.f32 %v679, %v870
        %v872 = vpop.f32.mrb[0].mxu0
        %873 = vmatprep.mubr.f32.mxu0 0.0
        %874 = vmatmul.mubr.f32.gmra.mrb[0].mxu0 %v728
        %v875 = vpop.f32.mrb[0].mxu0
        %v876 = vadd.f32 %v679, %v875
        %v877 = vpop.f32.mrb[0].mxu0
        %878 = vdwg.mxu0
        %v879 = vmax.f32 %v801, 0.0
        %v880 = vmax.f32 %v806, 0.0
        %v881 = vmax.f32 %v811, 0.0
        %v882 = vmax.f32 %v816, 0.0
        %v883 = vmax.f32 %v821, 0.0
        %v884 = vmax.f32 %v826, 0.0
        %v885 = vmax.f32 %v831, 0.0
        %v886 = vmax.f32 %v836, 0.0
        %v887 = vmax.f32 %v841, 0.0
        %v888 = vmax.f32 %v846, 0.0
        %v889 = vmax.f32 %v851, 0.0
        %v890 = vmax.f32 %v856, 0.0
        %v891 = vmax.f32 %v861, 0.0
        %v892 = vmax.f32 %v866, 0.0
        %v893 = vmax.f32 %v871, 0.0
        %v894 = vmax.f32 %v876, 0.0
        %v895 = vld [vmem:[#allocation2] sm:$0xff]
        %v896 = vld [vmem:[#allocation2 + $0x8] sm:$0xff]
        %v897 = vld [vmem:[#allocation2 + $0x10] sm:$0xff]
        %v898 = vld [vmem:[#allocation2 + $0x18] sm:$0xff]
        %v899 = vld [vmem:[%s305] sm:$0xf]
        %v900 = vld [vmem:[%s305 + $0x4] sm:$0xf]
        %v901 = vld [vmem:[%s305 + $0x8] sm:$0xf]
        %v902 = vld [vmem:[%s305 + $0xc] sm:$0xf]
        %v903 = vunpack.c.l.bf16 %v899
        %v904 = vunpack.c.l.bf16 %v900
        %v905 = vunpack.c.l.bf16 %v901
        %v906 = vunpack.c.l.bf16 %v902
        %907 = vmatprep.subr.mxu0 0.0
        %908 = vmatpush1.msra.mxu0 %v879
        %909 = vmatprep.subr.mxu0 0.0
        %910 = vmatpush1.msra.mxu0 %v880
        %911 = vmatprep.subr.mxu0 0.0
        %912 = vmatpush1.msra.mxu0 %v881
        %913 = vmatprep.subr.mxu0 0.0
        %914 = vmatpush1.msra.mxu0 %v882
        %915 = vmatprep.subr.mxu0 0.0
        %916 = vmatpush1.msra.mxu0 %v883
        %917 = vmatprep.subr.mxu0 0.0
        %918 = vmatpush1.msra.mxu0 %v884
        %919 = vmatprep.subr.mxu0 0.0
        %920 = vmatpush1.msra.mxu0 %v885
        %921 = vmatprep.subr.mxu0 0.0
        %922 = vmatpush1.msra.mxu0 %v886
        %923 = vmatprep.subr.mxu0 0.0
        %924 = vmatpush1.msra.mxu0 %v887
        %925 = vmatprep.subr.mxu0 0.0
        %926 = vmatpush1.msra.mxu0 %v888
        %927 = vmatprep.subr.mxu0 0.0
        %928 = vmatpush1.msra.mxu0 %v889
        %929 = vmatprep.subr.mxu0 0.0
        %930 = vmatpush1.msra.mxu0 %v890
        %931 = vmatprep.subr.mxu0 0.0
        %932 = vmatpush1.msra.mxu0 %v891
        %933 = vmatprep.subr.mxu0 0.0
        %934 = vmatpush1.msra.mxu0 %v892
        %935 = vmatprep.subr.mxu0 0.0
        %936 = vmatpush1.msra.mxu0 %v893
        %937 = vmatprep.subr.mxu0 0.0
        %938 = vmatpush1.msra.mxu0 %v894
        %939 = vmatprep.subr.mxu0 0.0
        %940 = vmatpush1.msra.mxu0 0.0
        %941 = vmatprep.subr.mxu0 0.0
        %942 = vmatpush1.msra.mxu0 0.0
        %943 = vmatprep.subr.mxu0 0.0
        %944 = vmatpush1.msra.mxu0 0.0
        %945 = vmatprep.subr.mxu0 0.0
        %946 = vmatpush1.msra.mxu0 0.0
        %947 = vmatprep.subr.mxu0 0.0
        %948 = vmatpush1.msra.mxu0 0.0
        %949 = vmatprep.subr.mxu0 0.0
        %950 = vmatpush1.msra.mxu0 0.0
        %951 = vmatprep.subr.mxu0 0.0
        %952 = vmatpush1.msra.mxu0 0.0
        %953 = vmatprep.subr.mxu0 0.0
        %954 = vmatpush1.msra.mxu0 0.0
        %955 = vmatprep.subr.mxu0 0.0
        %956 = vmatpush1.msra.mxu0 0.0
        %957 = vmatprep.subr.mxu0 0.0
        %958 = vmatpush1.msra.mxu0 0.0
        %959 = vmatprep.subr.mxu0 0.0
        %960 = vmatpush1.msra.mxu0 0.0
        %961 = vmatprep.subr.mxu0 0.0
        %962 = vmatpush1.msra.mxu0 0.0
        %963 = vmatprep.subr.mxu0 0.0
        %964 = vmatpush1.msra.mxu0 0.0
        %965 = vmatprep.subr.mxu0 0.0
        %966 = vmatpush1.msra.mxu0 0.0
        %967 = vmatprep.subr.mxu0 0.0
        %968 = vmatpush1.msra.mxu0 0.0
        %969 = vmatprep.subr.mxu0 0.0
        %970 = vmatpush1.msra.mxu0 0.0
        %971 = vmatprep.mubr.f32.mxu0 0.0
        %972 = vmatmul.mubr.f32.gmra.mrb[0].mxu0 %v903
        %v973 = vpop.f32.mrb[0].mxu0
        %v974 = vadd.f32 0.0, %v973
        %v975 = vpop.f32.mrb[0].mxu0
        %976 = vmatprep.mubr.f32.mxu0 0.0
        %977 = vmatmul.mubr.f32.gmra.mrb[0].mxu0 %v904
        %v978 = vpop.f32.mrb[0].mxu0
        %v979 = vadd.f32 0.0, %v978
        %v980 = vpop.f32.mrb[0].mxu0
        %981 = vmatprep.mubr.f32.mxu0 0.0
        %982 = vmatmul.mubr.f32.gmra.mrb[0].mxu0 %v905
        %v983 = vpop.f32.mrb[0].mxu0
        %v984 = vadd.f32 0.0, %v983
        %v985 = vpop.f32.mrb[0].mxu0
        %986 = vmatprep.mubr.f32.mxu0 0.0
        %987 = vmatmul.mubr.f32.gmra.mrb[0].mxu0 %v906
        %v988 = vpop.f32.mrb[0].mxu0
        %v989 = vadd.f32 0.0, %v988
        %v990 = vpop.f32.mrb[0].mxu0
        %991 = vdwg.mxu0
        %v992 = vadd.f32 %v895, %v974
        %v993 = vadd.f32 %v896, %v979
        %v994 = vadd.f32 %v897, %v984
        %v995 = vadd.f32 %v898, %v989
        %vm996 = vcmask 523264
        %997 = vst.msk [vmem:[#allocation2] sm:$0xff] %vm996, %v992
        %998 = vst.msk [vmem:[#allocation2 + $0x8] sm:$0xff] %vm996, %v993
        %999 = vst.msk [vmem:[#allocation2 + $0x10] sm:$0xff] %vm996, %v994
        %1000 = vst.msk [vmem:[#allocation2 + $0x18] sm:$0xff] %vm996, %v995
        %p1001 = scmp.eq.s32.totalorder %s18, 1
        // Predicated region
        $region94: #{_device_forward.4} parent=84 // pred_check
          %p1002 = pneg %p1001
        $region95: #{_device_forward.4} parent=84 // pred_check_branch
          %1004 = sbr.rel (%p1002) target = $region97
        $region96: #{_device_forward.4} parent=84 // pred_region
          %v1005 = vld [vmem:[#allocation2] sm:$0xff]
          %v1006 = vld [vmem:[#allocation2 + $0x8] sm:$0xff]
          %v1007 = vld [vmem:[#allocation2 + $0x10] sm:$0xff]
          %v1008 = vld [vmem:[#allocation2 + $0x18] sm:$0xff]
          %v1009 = vld [vmem:[%s5] sm:$0xff]
          %v1010 = vld [vmem:[%s5 + $0x8] sm:$0xff]
          %v1011 = vld [vmem:[%s5 + $0x10] sm:$0xff]
          %v1012 = vld [vmem:[%s5 + $0x18] sm:$0xff]
          %v1013 = vld [vmem:[%s5 + $0x20] sm:$0xff]
          %v1014 = vld [vmem:[%s5 + $0x28] sm:$0xff]
          %v1015 = vld [vmem:[%s5 + $0x30] sm:$0xff]
          %v1016 = vld [vmem:[%s5 + $0x38] sm:$0xff]
          %v1017 = vld [vmem:[%s6] sm:$0x1]
          %v1019 = vlaneseq
          %v1020 = vshrl.u32 %v1019, 7
          %v1021 = vsub.s32 0, %v1020
          %v1022 = vrot.slane %v1017, %v1021
          %v1025 = vsel %vm996, %v1005, 0
          %v1028 = vsel %vm996, %v1006, 0
          %v1031 = vsel %vm996, %v1007, 0
          %v1034 = vsel %vm996, %v1008, 0
          %1036 = vmatprep.subr.mxu0 0.0
          %1037 = vmatpush1.msra.mxu0 %v1009
          %1038 = vmatprep.subr.mxu0 0.0
          %1039 = vmatpush1.msra.mxu0 %v1010
          %1040 = vmatprep.subr.mxu0 0.0
          %1041 = vmatpush1.msra.mxu0 %v1011
          %1042 = vmatprep.subr.mxu0 0.0
          %1043 = vmatpush1.msra.mxu0 %v1012
          %1044 = vmatprep.subr.mxu0 0.0
          %1045 = vmatpush1.msra.mxu0 %v1013
          %1046 = vmatprep.subr.mxu0 0.0
          %1047 = vmatpush1.msra.mxu0 %v1014
          %1048 = vmatprep.subr.mxu0 0.0
          %1049 = vmatpush1.msra.mxu0 %v1015
          %1050 = vmatprep.subr.mxu0 0.0
          %1051 = vmatpush1.msra.mxu0 %v1016
          %1052 = vmatprep.subr.mxu0 0.0
          %1053 = vmatpush1.msra.mxu0 0.0
          %1054 = vmatprep.subr.mxu0 0.0
          %1055 = vmatpush1.msra.mxu0 0.0
          %1056 = vmatprep.subr.mxu0 0.0
          %1057 = vmatpush1.msra.mxu0 0.0
          %1058 = vmatprep.subr.mxu0 0.0
          %1059 = vmatpush1.msra.mxu0 0.0
          %1060 = vmatprep.subr.mxu0 0.0
          %1061 = vmatpush1.msra.mxu0 0.0
          %1062 = vmatprep.subr.mxu0 0.0
          %1063 = vmatpush1.msra.mxu0 0.0
          %1064 = vmatprep.subr.mxu0 0.0
          %1065 = vmatpush1.msra.mxu0 0.0
          %1066 = vmatprep.subr.mxu0 0.0
          %1067 = vmatpush1.msra.mxu0 0.0
          %1068 = vmatprep.subr.mxu0 0.0
          %1069 = vmatpush1.msra.mxu0 0.0
          %1070 = vmatprep.subr.mxu0 0.0
          %1071 = vmatpush1.msra.mxu0 0.0
          %1072 = vmatprep.subr.mxu0 0.0
          %1073 = vmatpush1.msra.mxu0 0.0
          %1074 = vmatprep.subr.mxu0 0.0
          %1075 = vmatpush1.msra.mxu0 0.0
          %1076 = vmatprep.subr.mxu0 0.0
          %1077 = vmatpush1.msra.mxu0 0.0
          %1078 = vmatprep.subr.mxu0 0.0
          %1079 = vmatpush1.msra.mxu0 0.0
          %1080 = vmatprep.subr.mxu0 0.0
          %1081 = vmatpush1.msra.mxu0 0.0
          %1082 = vmatprep.subr.mxu0 0.0
          %1083 = vmatpush1.msra.mxu0 0.0
          %1084 = vmatprep.subr.mxu0 0.0
          %1085 = vmatpush1.msra.mxu0 0.0
          %1086 = vmatprep.subr.mxu0 0.0
          %1087 = vmatpush1.msra.mxu0 0.0
          %1088 = vmatprep.subr.mxu0 0.0
          %1089 = vmatpush1.msra.mxu0 0.0
          %1090 = vmatprep.subr.mxu0 0.0
          %1091 = vmatpush1.msra.mxu0 0.0
          %1092 = vmatprep.subr.mxu0 0.0
          %1093 = vmatpush1.msra.mxu0 0.0
          %1094 = vmatprep.subr.mxu0 0.0
          %1095 = vmatpush1.msra.mxu0 0.0
          %1096 = vmatprep.subr.mxu0 0.0
          %1097 = vmatpush1.msra.mxu0 0.0
          %1098 = vmatprep.subr.mxu0 0.0
          %1099 = vmatpush1.msra.mxu0 0.0
          %1100 = vmatprep.mubr.f32.mxu0 0.0
          %1101 = vmatmul.mubr.f32.gmra.mrb[0].mxu0 %v1025
          %v1102 = vpop.f32.mrb[0].mxu0
          %v1103 = vadd.f32 %v1022, %v1102
          %v1104 = vpop.f32.mrb[0].mxu0
          %1105 = vmatprep.mubr.f32.mxu0 0.0
          %1106 = vmatmul.mubr.f32.gmra.mrb[0].mxu0 %v1028
          %v1107 = vpop.f32.mrb[0].mxu0
          %v1108 = vadd.f32 %v1022, %v1107
          %v1109 = vpop.f32.mrb[0].mxu0
          %1110 = vmatprep.mubr.f32.mxu0 0.0
          %1111 = vmatmul.mubr.f32.gmra.mrb[0].mxu0 %v1031
          %v1112 = vpop.f32.mrb[0].mxu0
          %v1113 = vadd.f32 %v1022, %v1112
          %v1114 = vpop.f32.mrb[0].mxu0
          %1115 = vmatprep.mubr.f32.mxu0 0.0
          %1116 = vmatmul.mubr.f32.gmra.mrb[0].mxu0 %v1034
          %v1117 = vpop.f32.mrb[0].mxu0
          %v1118 = vadd.f32 %v1022, %v1117
          %v1119 = vpop.f32.mrb[0].mxu0
          %1120 = vdwg.mxu0
          %v1121 = vmul.f32 %v1103, %v1103
          %v1122 = vmul.f32 %v1108, %v1108
          %v1123 = vmul.f32 %v1113, %v1113
          %v1124 = vmul.f32 %v1118, %v1118
          %vm1125 = vcmask 261120
          %v1126 = vsel %vm1125, %v1121, 0.0
          %1127 = vadd.xlane.f32.xlu0 %v1126
          %v1128 = vpop.xlane.xlu0 %1127
          %v1129 = vsel %vm1125, %v1122, 0.0
          %1130 = vadd.xlane.f32.xlu0 %v1129
          %v1131 = vpop.xlane.xlu0 %1130
          %v1132 = vsel %vm1125, %v1123, 0.0
          %1133 = vadd.xlane.f32.xlu0 %v1132
          %v1134 = vpop.xlane.xlu0 %1133
          %v1135 = vsel %vm1125, %v1124, 0.0
          %1136 = vadd.xlane.f32.xlu0 %v1135
          %v1137 = vpop.xlane.xlu0 %1136
          %v1138 = vmax.f32 %v1128, 1e-24
          %v1139 = vmax.f32 %v1131, 1e-24
          %v1140 = vmax.f32 %v1134, 1e-24
          %v1141 = vmax.f32 %v1137, 1e-24
          %v1142 = vrsqrt.pop %v1138
          %v1143 = vrsqrt.pop %v1139
          %v1144 = vrsqrt.pop %v1140
          %v1145 = vrsqrt.pop %v1141
          %v1146 = vmul.f32 %v1103, %v1142
          %v1147 = vmul.f32 %v1108, %v1143
          %v1148 = vmul.f32 %v1113, %v1144
          %v1149 = vmul.f32 %v1118, %v1145
          %1150 = vst.msk [vmem:[%s7] sm:$0xff] %vm1125, %v1146
          %1151 = vst.msk [vmem:[%s7 + $0x8] sm:$0xff] %vm1125, %v1147
          %1152 = vst.msk [vmem:[%s7 + $0x10] sm:$0xff] %vm1125, %v1148
          %1153 = vst.msk [vmem:[%s7 + $0x18] sm:$0xff] %vm1125, %v1149
        $region97: #{_device_forward.4} parent=84 // pred_fallthru
          _
        // Predicated region
        $region98: #{_device_forward.4} parent=84 // pred_check
          %p1154 = pneg %p188
        $region99: #{_device_forward.4} parent=84 // pred_check_branch
          %1156 = sbr.rel (%p1154) target = $region101
        $region100: #{_device_forward.4} parent=84 // pred_region
          _
        $region101: #{_device_forward.4} parent=84 // pred_fallthru
          _
        // Predicated region
        $region102: #{_device_forward.4} parent=84 // pred_check
          %p1157 = pneg %p188
        $region103: #{_device_forward.4} parent=84 // pred_check_branch
          %1159 = sbr.rel (%p1157) target = $region105
        $region104: #{_device_forward.4} parent=84 // pred_region
          _
        $region105: #{_device_forward.4} parent=84 // pred_fallthru
          _
      $region85: #{_device_forward.4} parent=5 // pred_fallthru
        _
      %p1160 = scmp.le.s32.totalorder 2, %s13
      // Predicated region
      $region106: #{_device_forward.4} parent=5 // pred_check
        %p1161 = pneg %p1160
      $region107: #{_device_forward.4} parent=5 // pred_check_branch
        %1163 = sbr.rel (%p1161) target = $region109
      $region108: #{_device_forward.4} parent=5 // pred_region
        %s1164 = ssub.s32 %s13, 2
      $region109: #{_device_forward.4} parent=5 // pred_fallthru
        _
    $region6: #{_device_forward.4} parent=1 // loop_footer
      %s17 = sadd.s32 1, %s13
    $region7: #{_device_forward.4} parent=1 // loop_footer_branch
      %12 = sbr.rel target = $region3
    $region8: #{_device_forward.4} parent=1 // loop_exit
      _

// kernel: squeeze.7
$region0: #{squeeze.7}
  %s0 = inlined_call_operand.vmem [shape: s32[128], index: 0, kind: input, shape index: {}]
  %s1 = inlined_call_operand.vmem [shape: s32[32,4], index: 1, kind: output, shape index: {}]
  $region1: #{squeeze.7} parent=0
    #allocation0 [shape = 'u8[4096]{0}', space=vmem, size = 0x1000, scoped, tag = 'scoped mem for input reshape']
    %s3 = sshllo.u32 0, 1
    %v4 = vld [vmem:[%s0] sm:%s3]
    %5 = vst [vmem:[#allocation0] sm:%s3] %v4
    %v6 = vld [vmem:[#allocation0] sm:$0x1]
    %vm7 = vcmask 31744
    %8 = vst.msk [vmem:[%s1] sm:$0x1] %vm7, %v6
    %v9 = vld [vmem:[#allocation0] sm:$0x1]
    %10 = vrot.lane.b32.xlu0 %v9, 124
    %v11 = vpop.permute.xlu0 %10
    %vm12 = vcmask 31744
    %s13 = scalar_lea.vmem %s1, 1
    %14 = vst.msk [vmem:[%s13] sm:$0x1] %vm12, %v11
    %v15 = vld [vmem:[#allocation0] sm:$0x1]
    %16 = vrot.lane.b32.xlu0 %v15, 120
    %v17 = vpop.permute.xlu0 %16
    %vm18 = vcmask 31744
    %s19 = scalar_lea.vmem %s1, 2
    %20 = vst.msk [vmem:[%s19] sm:$0x1] %vm18, %v17
    %v21 = vld [vmem:[#allocation0] sm:$0x1]
    %22 = vrot.lane.b32.xlu0 %v21, 116
    %v23 = vpop.permute.xlu0 %22
    %vm24 = vcmask 31744
    %s25 = scalar_lea.vmem %s1, 3
    %26 = vst.msk [vmem:[%s25] sm:$0x1] %vm24, %v23
    %v27 = vld [vmem:[#allocation0] sm:$0x1]
    %28 = vrot.lane.b32.xlu0 %v27, 112
    %v29 = vpop.permute.xlu0 %28
    %vm30 = vcmask 31744
    %s31 = scalar_lea.vmem %s1, 4
    %32 = vst.msk [vmem:[%s31] sm:$0x1] %vm30, %v29
    %v33 = vld [vmem:[#allocation0] sm:$0x1]
    %34 = vrot.lane.b32.xlu0 %v33, 108
    %v35 = vpop.permute.xlu0 %34
    %vm36 = vcmask 31744
    %s37 = scalar_lea.vmem %s1, 5
    %38 = vst.msk [vmem:[%s37] sm:$0x1] %vm36, %v35
    %v39 = vld [vmem:[#allocation0] sm:$0x1]
    %40 = vrot.lane.b32.xlu0 %v39, 104
    %v41 = vpop.permute.xlu0 %40
    %vm42 = vcmask 31744
    %s43 = scalar_lea.vmem %s1, 6
    %44 = vst.msk [vmem:[%s43] sm:$0x1] %vm42, %v41
    %v45 = vld [vmem:[#allocation0] sm:$0x1]
    %46 = vrot.lane.b32.xlu0 %v45, 100
    %v47 = vpop.permute.xlu0 %46
    %vm48 = vcmask 31744
    %s49 = scalar_lea.vmem %s1, 7
    %50 = vst.msk [vmem:[%s49] sm:$0x1] %vm48, %v47
    %v51 = vld [vmem:[#allocation0] sm:$0x1]
    %52 = vrot.lane.b32.xlu0 %v51, 96
    %v53 = vpop.permute.xlu0 %52
    %vm54 = vcmask 31744
    %s55 = scalar_lea.vmem %s1, 8
    %56 = vst.msk [vmem:[%s55] sm:$0x1] %vm54, %v53
    %v57 = vld [vmem:[#allocation0] sm:$0x1]
    %58 = vrot.lane.b32.xlu0 %v57, 92
    %v59 = vpop.permute.xlu0 %58
    %vm60 = vcmask 31744
    %s61 = scalar_lea.vmem %s1, 9
    %62 = vst.msk [vmem:[%s61] sm:$0x1] %vm60, %v59
    %v63 = vld [vmem:[#allocation0] sm:$0x1]
    %64 = vrot.lane.b32.xlu0 %v63, 88
    %v65 = vpop.permute.xlu0 %64
    %vm66 = vcmask 31744
    %s67 = scalar_lea.vmem %s1, 10
    %68 = vst.msk [vmem:[%s67] sm:$0x1] %vm66, %v65
    %v69 = vld [vmem:[#allocation0] sm:$0x1]
    %70 = vrot.lane.b32.xlu0 %v69, 84
    %v71 = vpop.permute.xlu0 %70
    %vm72 = vcmask 31744
    %s73 = scalar_lea.vmem %s1, 11
    %74 = vst.msk [vmem:[%s73] sm:$0x1] %vm72, %v71
    %v75 = vld [vmem:[#allocation0] sm:$0x1]
    %76 = vrot.lane.b32.xlu0 %v75, 80
    %v77 = vpop.permute.xlu0 %76
    %vm78 = vcmask 31744
    %s79 = scalar_lea.vmem %s1, 12
    %80 = vst.msk [vmem:[%s79] sm:$0x1] %vm78, %v77
    %v81 = vld [vmem:[#allocation0] sm:$0x1]
    %82 = vrot.lane.b32.xlu0 %v81, 76
    %v83 = vpop.permute.xlu0 %82
    %vm84 = vcmask 31744
    %s85 = scalar_lea.vmem %s1, 13
    %86 = vst.msk [vmem:[%s85] sm:$0x1] %vm84, %v83
    %v87 = vld [vmem:[#allocation0] sm:$0x1]
    %88 = vrot.lane.b32.xlu0 %v87, 72
    %v89 = vpop.permute.xlu0 %88
    %vm90 = vcmask 31744
    %s91 = scalar_lea.vmem %s1, 14
    %92 = vst.msk [vmem:[%s91] sm:$0x1] %vm90, %v89
    %v93 = vld [vmem:[#allocation0] sm:$0x1]
    %94 = vrot.lane.b32.xlu0 %v93, 68
    %v95 = vpop.permute.xlu0 %94
    %vm96 = vcmask 31744
    %s97 = scalar_lea.vmem %s1, 15
    %98 = vst.msk [vmem:[%s97] sm:$0x1] %vm96, %v95
    %v99 = vld [vmem:[#allocation0] sm:$0x1]
    %100 = vrot.lane.b32.xlu0 %v99, 64
    %v101 = vpop.permute.xlu0 %100
    %vm102 = vcmask 31744
    %s103 = scalar_lea.vmem %s1, 16
    %104 = vst.msk [vmem:[%s103] sm:$0x1] %vm102, %v101
    %v105 = vld [vmem:[#allocation0] sm:$0x1]
    %106 = vrot.lane.b32.xlu0 %v105, 60
    %v107 = vpop.permute.xlu0 %106
    %vm108 = vcmask 31744
    %s109 = scalar_lea.vmem %s1, 17
    %110 = vst.msk [vmem:[%s109] sm:$0x1] %vm108, %v107
    %v111 = vld [vmem:[#allocation0] sm:$0x1]
    %112 = vrot.lane.b32.xlu0 %v111, 56
    %v113 = vpop.permute.xlu0 %112
    %vm114 = vcmask 31744
    %s115 = scalar_lea.vmem %s1, 18
    %116 = vst.msk [vmem:[%s115] sm:$0x1] %vm114, %v113
    %v117 = vld [vmem:[#allocation0] sm:$0x1]
    %118 = vrot.lane.b32.xlu0 %v117, 52
    %v119 = vpop.permute.xlu0 %118
    %vm120 = vcmask 31744
    %s121 = scalar_lea.vmem %s1, 19
    %122 = vst.msk [vmem:[%s121] sm:$0x1] %vm120, %v119
    %v123 = vld [vmem:[#allocation0] sm:$0x1]
    %124 = vrot.lane.b32.xlu0 %v123, 48
    %v125 = vpop.permute.xlu0 %124
    %vm126 = vcmask 31744
    %s127 = scalar_lea.vmem %s1, 20
    %128 = vst.msk [vmem:[%s127] sm:$0x1] %vm126, %v125
    %v129 = vld [vmem:[#allocation0] sm:$0x1]
    %130 = vrot.lane.b32.xlu0 %v129, 44
    %v131 = vpop.permute.xlu0 %130
    %vm132 = vcmask 31744
    %s133 = scalar_lea.vmem %s1, 21
    %134 = vst.msk [vmem:[%s133] sm:$0x1] %vm132, %v131
    %v135 = vld [vmem:[#allocation0] sm:$0x1]
    %136 = vrot.lane.b32.xlu0 %v135, 40
    %v137 = vpop.permute.xlu0 %136
    %vm138 = vcmask 31744
    %s139 = scalar_lea.vmem %s1, 22
    %140 = vst.msk [vmem:[%s139] sm:$0x1] %vm138, %v137
    %v141 = vld [vmem:[#allocation0] sm:$0x1]
    %142 = vrot.lane.b32.xlu0 %v141, 36
    %v143 = vpop.permute.xlu0 %142
    %vm144 = vcmask 31744
    %s145 = scalar_lea.vmem %s1, 23
    %146 = vst.msk [vmem:[%s145] sm:$0x1] %vm144, %v143
    %v147 = vld [vmem:[#allocation0] sm:$0x1]
    %148 = vrot.lane.b32.xlu0 %v147, 32
    %v149 = vpop.permute.xlu0 %148
    %vm150 = vcmask 31744
    %s151 = scalar_lea.vmem %s1, 24
    %152 = vst.msk [vmem:[%s151] sm:$0x1] %vm150, %v149
    %v153 = vld [vmem:[#allocation0] sm:$0x1]
    %154 = vrot.lane.b32.xlu0 %v153, 28
    %v155 = vpop.permute.xlu0 %154
    %vm156 = vcmask 31744
    %s157 = scalar_lea.vmem %s1, 25
    %158 = vst.msk [vmem:[%s157] sm:$0x1] %vm156, %v155
    %v159 = vld [vmem:[#allocation0] sm:$0x1]
    %160 = vrot.lane.b32.xlu0 %v159, 24
    %v161 = vpop.permute.xlu0 %160
    %vm162 = vcmask 31744
    %s163 = scalar_lea.vmem %s1, 26
    %164 = vst.msk [vmem:[%s163] sm:$0x1] %vm162, %v161
    %v165 = vld [vmem:[#allocation0] sm:$0x1]
    %166 = vrot.lane.b32.xlu0 %v165, 20
    %v167 = vpop.permute.xlu0 %166
    %vm168 = vcmask 31744
    %s169 = scalar_lea.vmem %s1, 27
    %170 = vst.msk [vmem:[%s169] sm:$0x1] %vm168, %v167
    %v171 = vld [vmem:[#allocation0] sm:$0x1]
    %172 = vrot.lane.b32.xlu0 %v171, 16
    %v173 = vpop.permute.xlu0 %172
    %vm174 = vcmask 31744
    %s175 = scalar_lea.vmem %s1, 28
    %176 = vst.msk [vmem:[%s175] sm:$0x1] %vm174, %v173
    %v177 = vld [vmem:[#allocation0] sm:$0x1]
    %178 = vrot.lane.b32.xlu0 %v177, 12
    %v179 = vpop.permute.xlu0 %178
    %vm180 = vcmask 31744
    %s181 = scalar_lea.vmem %s1, 29
    %182 = vst.msk [vmem:[%s181] sm:$0x1] %vm180, %v179
    %v183 = vld [vmem:[#allocation0] sm:$0x1]
    %184 = vrot.lane.b32.xlu0 %v183, 8
    %v185 = vpop.permute.xlu0 %184
    %vm186 = vcmask 31744
    %s187 = scalar_lea.vmem %s1, 30
    %188 = vst.msk [vmem:[%s187] sm:$0x1] %vm186, %v185
    %v189 = vld [vmem:[#allocation0] sm:$0x1]
    %190 = vrot.lane.b32.xlu0 %v189, 4
    %v191 = vpop.permute.xlu0 %190
    %vm192 = vcmask 31744
    %s193 = scalar_lea.vmem %s1, 31
    %194 = vst.msk [vmem:[%s193] sm:$0x1] %vm192, %v191

</llo_original>
